<compile_context>
chip_gen: v7x
topology: tpu7x:2x2x1
jax: 0.10.0
libtpu: 0.0.40
codegen_flags: <defaults>
</compile_context>

<pallas_src>
import functools

import jax
import jax.numpy as jnp
import numpy as np
from jax.experimental import pallas as pl
from jax.experimental.pallas import tpu as pltpu


# ----------------------------------------------------------------------------------
# Fused kernel: grid = (layer, batch); one grid step = one image at one layer stage.
#   L == 0            : upsample (1 matmul) + channel concat + conv0
#   L in [1, depth-1] : BN(prev layer, hoisted) + ReLU + conv_L
#   L == depth        : final BN + ReLU  -> output
# ----------------------------------------------------------------------------------
def _decoder_fused_kernel(x_ref, xb_ref, rt_ref, w0_ref, wr_ref, gsc_ref, gsh_ref,
                          out_ref,
                          z_scr, ssum_scr, ssq_scr, sc_scr, sh_scr,
                          *, depth, H, W, n, eps, mxu_dtype):
    L = pl.program_id(0)
    b = pl.program_id(1)
    HW = H * W
    inv_n = 1.0 / n

    # lane-position masks killing the dx = +-1 wrap-around (dy overreach lands in the
    # zero lane-halo added inside conv3x3)
    X = jax.lax.broadcasted_iota(jnp.int32, (1, HW), 1) % W
    not_left = X >= 1
    not_right = X <= W - 2

    def conv3x3(img, wmat):
        """img: [Cin, HW] f32 (channel-major).  wmat: [Co, 9*Cin] (MXU dtype).

        Transposed im2col: 9 lane-shifted copies of the image stacked along the
        sublane axis -> ONE MXU matmul with N = HW output lanes (lane-dense)."""
        C = img.shape[0]
        P = W + 1                                    # lane halo covers |dy*W + dx| <= W+1
        zpad = jnp.zeros((C, P), img.dtype)
        xp = jnp.concatenate([zpad, img, zpad], axis=1)          # [C, HW + 2P]
        taps = []
        for dy in (-1, 0, 1):
            for dx in (-1, 0, 1):
                s = dy * W + dx
                t = xp[:, P + s:P + s + HW]                      # value slice (lane shift)
                if dx == -1:
                    t = jnp.where(not_left, t, jnp.zeros_like(t))
                elif dx == 1:
                    t = jnp.where(not_right, t, jnp.zeros_like(t))
                taps.append(t)
        patch = jnp.concatenate(taps, axis=0).astype(mxu_dtype)  # [9*Cin, HW]
        return jnp.dot(wmat, patch, preferred_element_type=jnp.float32)   # [Co, HW] f32

    def accum_stats(z):
        # per-image partial BN statistics, accumulated in persistent VMEM
        ssum_scr[...] += jnp.sum(z, axis=1, keepdims=True)
        ssq_scr[...] += jnp.sum(z * z, axis=1, keepdims=True)
        # TODO(synk): E[x^2]-E[x]^2 from raw f32 sums cancels badly at very large
        #             n = B*H*W; switch to shifted / Welford-style sums for production.

    def finalize_bn(lprev):
        """Once per layer (at b == 0): fold the accumulated batch statistics of layer
        `lprev` into per-channel scale/shift, then reset the accumulators."""
        @pl.when(b == 0)
        def _():
            mean = ssum_scr[...] * inv_n                         # [Co, 1]
            var = ssq_scr[...] * inv_n - mean * mean             # biased variance
            scale = jax.lax.rsqrt(var + eps) * gsc_ref[:, lprev:lprev + 1]
            sc_scr[...] = scale
            sh_scr[...] = gsh_ref[:, lprev:lprev + 1] - mean * scale
            ssum_scr[...] = jnp.zeros_like(ssum_scr)
            ssq_scr[...] = jnp.zeros_like(ssq_scr)

    def bn_relu(zp):
        return jnp.maximum(zp * sc_scr[...] + sh_scr[...], 0.0)

    # ---- layer 0: bilinear upsample (one matmul) + channel concat + conv ----------
    @pl.when(L == 0)
    def _():
        @pl.when(b == 0)
        def _():
            ssum_scr[...] = jnp.zeros_like(ssum_scr)
            ssq_scr[...] = jnp.zeros_like(ssq_scr)
        ups = jnp.dot(x_ref[0].astype(mxu_dtype), rt_ref[...],
                      preferred_element_type=jnp.float32)         # [Cs, HW] f32
        # channel concat == stacking along sublanes (weight rows match this order)
        img = jnp.concatenate([ups, xb_ref[0].astype(jnp.float32)], axis=0)  # [Cin, HW]
        z = conv3x3(img, w0_ref[...])         # conv bias dropped (cancelled by BN mean)
        z_scr[b] = z
        out_ref[0] = z                        # keeps the out buffer deterministic; overwritten
        accum_stats(z)

    # ---- layers 1..depth-1: BN(prev, hoisted) + ReLU + conv ------------------------
    for l in range(1, depth):
        @pl.when(L == l)
        def _(l=l):
            finalize_bn(l - 1)
            a = bn_relu(z_scr[b])                                 # [Co, HW] f32
            z = conv3x3(a, wr_ref[l - 1])
            z_scr[b] = z
            out_ref[0] = z
            accum_stats(z)

    # ---- final BN + ReLU -----------------------------------------------------------
    @pl.when(L == depth)
    def _():
        finalize_bn(depth - 1)
        out_ref[0] = bn_relu(z_scr[b])


# ----------------------------------------------------------------------------------
# Wrapper
# ----------------------------------------------------------------------------------
def interp_matrix(out_size, in_size):
    """1-D interpolation matrix for bilinear resize with align_corners=True."""
    if out_size == 1:
        return jnp.zeros((1, in_size), jnp.float32).at[0, 0].set(1.0)
    pos = jnp.arange(out_size, dtype=jnp.float32) * (in_size - 1) / (out_size - 1)
    lo = jnp.clip(jnp.floor(pos).astype(jnp.int32), 0, in_size - 1)
    hi = jnp.minimum(lo + 1, in_size - 1)
    frac = pos - lo.astype(jnp.float32)
    m = jnp.zeros((out_size, in_size), jnp.float32)
    m = m.at[jnp.arange(out_size), lo].add(1.0 - frac)
    m = m.at[jnp.arange(out_size), hi].add(frac)
    return m


def _vmem_limit_bytes():
    try:
        cap = int(pltpu.get_tpu_info().vmem_capacity_bytes)   # 128 MiB v5e/v6e, 64 MiB v7x
        return min(3 * cap // 4, 96 * 1024 * 1024)
    except Exception:
        return 32 * 1024 * 1024


def decoder_forward(x_big, x, params, *, eps=1e-5, mxu_dtype=jnp.bfloat16):
    """x_big: [B, Cb, H, W], x: [B, Cs, h, w] (NCHW)  ->  [B, Co, H, W] (NCHW).

    params: list of per-layer tuples (w_hwio[3,3,Cin,Co], bias[Co], gamma[Co], beta[Co]).
    Conv biases are unused: a bias added before training-mode BN is cancelled exactly
    by the mean subtraction (only the normalized forward is reproduced).
    """
    B, Cb, H, W = x_big.shape
    _, Cs, h, w = x.shape
    depth = len(params)
    Co = params[0][0].shape[-1]
    HW, hw = H * W, h * w

    # channel-major per-image slabs: NCHW -> [B, C, H*W] is a FREE reshape (no transpose)
    xb_flat = x_big.reshape(B, Cb, HW)
    x_flat = x.reshape(B, Cs, hw)

    # separable bilinear resize folded into one matmul:  ups[C, HW] = x[C, hw] @ rt
    rt = jnp.kron(interp_matrix(H, h), interp_matrix(W, w)).T.astype(mxu_dtype)  # [hw, HW]

    def wmat(wv):      # HWIO [3,3,Ci,Co] -> [Co, 9*Ci], tap-major (dy,dx) then ci
        ci = wv.shape[2]
        return jnp.transpose(wv.reshape(9, ci, Co), (2, 0, 1)) \
                  .reshape(Co, 9 * ci).astype(mxu_dtype)

    w0 = wmat(params[0][0])                                            # [Co, 9*(Cs+Cb)]
    if depth >= 2:
        wr = jnp.stack([wmat(params[i][0]) for i in range(1, depth)])  # [depth-1, Co, 9*Co]
    else:
        wr = jnp.zeros((1, Co, 9 * Co), mxu_dtype)                     # unused placeholder
    gsc = jnp.stack([params[i][2] for i in range(depth)], axis=1).astype(jnp.float32)  # [Co, depth]
    gsh = jnp.stack([params[i][3] for i in range(depth)], axis=1).astype(jnp.float32)

    def full(a):
        return pl.BlockSpec(a.shape, lambda L, b: (0,) * a.ndim)

    # x / x_big are only consumed at layer 0; pin their block to 0 afterwards so the
    # pipeline does not re-DMA them on every layer pass.
    img_idx = lambda L, b: (jnp.where(L == 0, b, 0), 0, 0)

    kernel = functools.partial(
        _decoder_fused_kernel, depth=depth, H=H, W=W,
        n=float(B * HW), eps=eps, mxu_dtype=mxu_dtype)

    out = pl.pallas_call(
        kernel,
        grid=(depth + 1, B),                  # layer outer (sequential), batch inner
        out_shape=jax.ShapeDtypeStruct((B, Co, HW), jnp.float32),
        in_specs=[pl.BlockSpec((1, Cs, hw), img_idx),
                  pl.BlockSpec((1, Cb, HW), img_idx),
                  full(rt), full(w0), full(wr), full(gsc), full(gsh)],
        out_specs=pl.BlockSpec((1, Co, HW), lambda L, b: (b, 0, 0)),
        scratch_shapes=[pltpu.VMEM((B, Co, HW), jnp.float32),   # pre-BN conv outputs (resident)
                        pltpu.VMEM((Co, 1), jnp.float32),       # batch sum
                        pltpu.VMEM((Co, 1), jnp.float32),       # batch sum of squares
                        pltpu.VMEM((Co, 1), jnp.float32),       # BN scale = rstd * gamma
                        pltpu.VMEM((Co, 1), jnp.float32)],      # BN shift = beta - mean*scale
        compiler_params=pltpu.CompilerParams(
            # both axes carry sequential dependencies (cross-batch BN stats, layer order)
            dimension_semantics=("arbitrary", "arbitrary"),
            vmem_limit_bytes=_vmem_limit_bytes()),
    )(x_flat, xb_flat, rt, w0, wr, gsc, gsh)

    return out.reshape(B, Co, H, W)           # free reshape back to NCHW


# ----------------------------------------------------------------------------------
# Pure-JAX reference (mirrors the PyTorch forward for a freshly constructed module)
# ----------------------------------------------------------------------------------
def reference_forward(x_big, x, params, eps=1e-5):
    B, Cb, H, W = x_big.shape
    _, Cs, h, w = x.shape
    R = jnp.kron(interp_matrix(H, h), interp_matrix(W, w))
    ups = jnp.einsum('sk,bck->bcs', R, x.reshape(B, Cs, h * w)).reshape(B, Cs, H, W)
    y = jnp.concatenate([ups, x_big], axis=1)
    for (wv, bv, gv, bev) in params:
        w_oihw = jnp.transpose(wv, (3, 2, 0, 1))
        zc = jax.lax.conv_general_dilated(
            y, w_oihw, window_strides=(1, 1), padding=((1, 1), (1, 1)),
            dimension_numbers=('NCHW', 'OIHW', 'NCHW'))
        zc = zc + bv[None, :, None, None]
        mean = jnp.mean(zc, axis=(0, 2, 3), keepdims=True)
        var = jnp.mean((zc - mean) ** 2, axis=(0, 2, 3), keepdims=True)
        zc = (zc - mean) * jax.lax.rsqrt(var + eps)
        y = jnp.maximum(zc * gv[None, :, None, None] + bev[None, :, None, None], 0.0)
    return y


# ----------------------------------------------------------------------------------
if __name__ == "__main__":
    # Decoder(inp_channels=8, out_channels=8, depth=2, mode='bilinear', activation='relu')
    B, Cb, Cs = 2, 4, 4              # x_big channels + x channels = inp_channels = 8
    H, W, h, w = 16, 16, 8, 8
    Cin, Co, depth = Cb + Cs, 8, 2

    key = jax.random.PRNGKey(0)
    ks = jax.random.split(key, 2 + 4 * depth)
    x_big = jax.random.normal(ks[0], (B, Cb, H, W), jnp.float32)
    x = jax.random.normal(ks[1], (B, Cs, h, w), jnp.float32)

    params = []
    ci = Cin
    for i in range(depth):
        k0, k1, k2, k3 = ks[2 + 4 * i: 6 + 4 * i]
        params.append((0.1 * jax.random.normal(k0, (3, 3, ci, Co), jnp.float32),   # HWIO
                       0.1 * jax.random.normal(k1, (Co,), jnp.float32),            # bias
                       1.0 + 0.1 * jax.random.normal(k2, (Co,), jnp.float32),      # gamma
                       0.1 * jax.random.normal(k3, (Co,), jnp.float32)))           # beta
        ci = Co

    ref = jax.block_until_ready(reference_forward(x_big, x, params))

    # algorithm check with f32 MXU operands (tight tolerance)
    out_f32 = jax.block_until_ready(
        decoder_forward(x_big, x, params, mxu_dtype=jnp.float32))
    np.testing.assert_allclose(np.asarray(out_f32), np.asarray(ref), rtol=2e-3, atol=2e-3)

    # performance configuration: bf16 MXU operands, f32 accumulation / BN stats
    out = jax.block_until_ready(decoder_forward(x_big, x, params))
    np.testing.assert_allclose(np.asarray(out), np.asarray(ref), rtol=6e-2, atol=6e-2)

    assert out.shape == (B, Co, H, W)
    print("KERNEL_OK")
</pallas_src>

<mosaic_0001>
module attributes {stable_mosaic.version = 11 : i64} {
  func.func @_decoder_fused_kernel(%arg0: i32, %arg1: i32, %arg2: memref<1x4x64xf32, #tpu.memory_space<vmem>>, %arg3: memref<1x4x256xf32, #tpu.memory_space<vmem>>, %arg4: memref<64x256xf32, #tpu.memory_space<vmem>>, %arg5: memref<8x72xf32, #tpu.memory_space<vmem>>, %arg6: memref<1x8x72xf32, #tpu.memory_space<vmem>>, %arg7: memref<8x2xf32, #tpu.memory_space<vmem>>, %arg8: memref<8x2xf32, #tpu.memory_space<vmem>>, %arg9: memref<1x8x256xf32, #tpu.memory_space<vmem>>, %arg10: memref<2x8x256xf32, #tpu.memory_space<vmem>>, %arg11: memref<8x1xf32, #tpu.memory_space<vmem>>, %arg12: memref<8x1xf32, #tpu.memory_space<vmem>>, %arg13: memref<8x1xf32, #tpu.memory_space<vmem>>, %arg14: memref<8x1xf32, #tpu.memory_space<vmem>>) attributes {dimension_semantics = [#tpu.dimension_semantics<arbitrary>, #tpu.dimension_semantics<arbitrary>], iteration_bounds = array<i64: 3, 2>, scalar_prefetch = 0 : i64, scratch_operands = 5 : i64, tpu.core_type = #tpu.core_type<tc>, window_params = [{transform_indices = @transform_0, window_bounds = array<i64: 1, 4, 64>}, {transform_indices = @transform_1, window_bounds = array<i64: 1, 4, 256>}, {pipeline_mode = #tpu.pipeline_mode<synchronous>, transform_indices = @transform_2, window_bounds = array<i64: 64, 256>}, {pipeline_mode = #tpu.pipeline_mode<synchronous>, transform_indices = @transform_3, window_bounds = array<i64: 8, 72>}, {pipeline_mode = #tpu.pipeline_mode<synchronous>, transform_indices = @transform_4, window_bounds = array<i64: 1, 8, 72>}, {pipeline_mode = #tpu.pipeline_mode<synchronous>, transform_indices = @transform_5, window_bounds = array<i64: 8, 2>}, {pipeline_mode = #tpu.pipeline_mode<synchronous>, transform_indices = @transform_6, window_bounds = array<i64: 8, 2>}, {transform_indices = @transform_7, window_bounds = array<i64: 1, 8, 256>}]} {
    %0 = tpu.iota {dimensions = array<i32: 1>} : vector<1x256xi32>
    %c16_i32 = arith.constant 16 : i32
    %c0_i32 = arith.constant 0 : i32
    %1 = arith.cmpi eq, %c16_i32, %c0_i32 : i32
    %c1_i32 = arith.constant 1 : i32
    %2 = arith.select %1, %c1_i32, %c16_i32 : i32
    %3 = vector.broadcast %2 : i32 to vector<1x256xi32>
    %4 = arith.remsi %0, %3 : vector<1x256xi32>
    %c0_i32_0 = arith.constant 0 : i32
    %5 = vector.broadcast %c0_i32_0 : i32 to vector<1x256xi32>
    %6 = arith.cmpi ne, %4, %5 : vector<1x256xi32>
    %c0_i32_1 = arith.constant 0 : i32
    %7 = vector.broadcast %c0_i32_1 : i32 to vector<1x256xi32>
    %8 = arith.cmpi slt, %4, %7 : vector<1x256xi32>
    %c0_i32_2 = arith.constant 0 : i32
    %9 = arith.cmpi slt, %2, %c0_i32_2 : i32
    %10 = vector.broadcast %9 : i1 to vector<1x256xi1>
    %11 = vector.broadcast %10 : vector<1x256xi1> to vector<1x256xi1>
    %12 = arith.xori %8, %11 : vector<1x256xi1>
    %13 = arith.andi %12, %6 : vector<1x256xi1>
    %14 = vector.broadcast %2 : i32 to vector<1x256xi32>
    %15 = arith.addi %4, %14 : vector<1x256xi32>
    %16 = arith.select %13, %15, %4 : vector<1x256xi1>, vector<1x256xi32>
    %c1_i32_3 = arith.constant 1 : i32
    %17 = vector.broadcast %c1_i32_3 : i32 to vector<1x256xi32>
    %18 = arith.cmpi sge, %16, %17 : vector<1x256xi32>
    %c14_i32 = arith.constant 14 : i32
    %19 = vector.broadcast %c14_i32 : i32 to vector<1x256xi32>
    %20 = arith.cmpi sle, %16, %19 : vector<1x256xi32>
    %c0_i32_4 = arith.constant 0 : i32
    %21 = arith.cmpi eq, %arg0, %c0_i32_4 : i32
    %22 = arith.extui %21 : i1 to i32
    %c0_i32_5 = arith.constant 0 : i32
    %23 = arith.cmpi ne, %22, %c0_i32_5 : i32
    scf.if %23 {
      %c0_i32_9 = arith.constant 0 : i32
      %30 = arith.cmpi eq, %arg1, %c0_i32_9 : i32
      %31 = arith.extui %30 : i1 to i32
      %c0_i32_10 = arith.constant 0 : i32
      %32 = arith.cmpi ne, %31, %c0_i32_10 : i32
      scf.if %32 {
        %cst_43 = arith.constant 0.000000e+00 : f32
        %96 = vector.broadcast %cst_43 : f32 to vector<8x1xf32>
        %c0_44 = arith.constant 0 : index
        %c0_45 = arith.constant 0 : index
        %97 = vector.load %arg11[%c0_44, %c0_45] : memref<8x1xf32, #tpu.memory_space<vmem>>, vector<8x1xf32>
        tpu.vector_store %arg11[%c0_44, %c0_45], %96 {strides = array<i32>} : memref<8x1xf32, #tpu.memory_space<vmem>>, vector<8x1xf32>,
        %cst_46 = arith.constant 0.000000e+00 : f32
        %98 = vector.broadcast %cst_46 : f32 to vector<8x1xf32>
        %c0_47 = arith.constant 0 : index
        %c0_48 = arith.constant 0 : index
        %99 = vector.load %arg12[%c0_47, %c0_48] : memref<8x1xf32, #tpu.memory_space<vmem>>, vector<8x1xf32>
        tpu.vector_store %arg12[%c0_47, %c0_48], %98 {strides = array<i32>} : memref<8x1xf32, #tpu.memory_space<vmem>>, vector<8x1xf32>,
      } else {
      }
      %c0 = arith.constant 0 : index
      %c0_11 = arith.constant 0 : index
      %c0_12 = arith.constant 0 : index
      %33 = vector.load %arg2[%c0, %c0_11, %c0_12] : memref<1x4x64xf32, #tpu.memory_space<vmem>>, vector<1x4x64xf32>
      %34 = vector.shape_cast %33 : vector<1x4x64xf32> to vector<4x64xf32>
      %c0_13 = arith.constant 0 : index
      %c0_14 = arith.constant 0 : index
      %35 = vector.load %arg4[%c0_13, %c0_14] : memref<64x256xf32, #tpu.memory_space<vmem>>, vector<64x256xf32>
      %cst = arith.constant dense<0.000000e+00> : vector<4x256xf32>
      %36 = tpu.matmul %34, %35, %cst {dimension_numbers = #tpu.dot_dimension_numbers<[1], [0], [0], [1], [0, 0, 1, 1], [], []>} : vector<4x64xf32>, vector<64x256xf32>, vector<4x256xf32> -> vector<4x256xf32>
      %c0_15 = arith.constant 0 : index
      %c0_16 = arith.constant 0 : index
      %c0_17 = arith.constant 0 : index
      %37 = vector.load %arg3[%c0_15, %c0_16, %c0_17] : memref<1x4x256xf32, #tpu.memory_space<vmem>>, vector<1x4x256xf32>
      %38 = vector.shape_cast %37 : vector<1x4x256xf32> to vector<4x256xf32>
      %39 = tpu.concatenate %36, %38 in 0 : vector<4x256xf32>, vector<4x256xf32> -> vector<8x256xf32>
      %c0_18 = arith.constant 0 : index
      %c0_19 = arith.constant 0 : index
      %40 = vector.load %arg5[%c0_18, %c0_19] : memref<8x72xf32, #tpu.memory_space<vmem>>, vector<8x72xf32>
      %cst_20 = arith.constant 0.000000e+00 : f32
      %41 = vector.broadcast %cst_20 : f32 to vector<8x17xf32>
      %42 = tpu.concatenate %41, %39, %41 in 1 : vector<8x17xf32>, vector<8x256xf32>, vector<8x17xf32> -> vector<8x290xf32>
      %43 = vector.extract_strided_slice %42 {offsets = [0, 0], sizes = [8, 256], strides = [1, 1]} : vector<8x290xf32> to vector<8x256xf32>
      %cst_21 = arith.constant 0.000000e+00 : f32
      %44 = vector.broadcast %cst_21 : f32 to vector<8x256xf32>
      %45 = vector.shape_cast %18 : vector<1x256xi1> to vector<1x256xi1>
      %46 = vector.broadcast %45 : vector<1x256xi1> to vector<8x256xi1>
      %47 = arith.select %46, %43, %44 : vector<8x256xi1>, vector<8x256xf32>
      %48 = vector.extract_strided_slice %42 {offsets = [0, 1], sizes = [8, 256], strides = [1, 1]} : vector<8x290xf32> to vector<8x256xf32>
      %49 = vector.extract_strided_slice %42 {offsets = [0, 2], sizes = [8, 256], strides = [1, 1]} : vector<8x290xf32> to vector<8x256xf32>
      %cst_22 = arith.constant 0.000000e+00 : f32
      %50 = vector.broadcast %cst_22 : f32 to vector<8x256xf32>
      %51 = vector.shape_cast %20 : vector<1x256xi1> to vector<1x256xi1>
      %52 = vector.broadcast %51 : vector<1x256xi1> to vector<8x256xi1>
      %53 = arith.select %52, %49, %50 : vector<8x256xi1>, vector<8x256xf32>
      %54 = vector.extract_strided_slice %42 {offsets = [0, 16], sizes = [8, 256], strides = [1, 1]} : vector<8x290xf32> to vector<8x256xf32>
      %cst_23 = arith.constant 0.000000e+00 : f32
      %55 = vector.broadcast %cst_23 : f32 to vector<8x256xf32>
      %56 = vector.shape_cast %18 : vector<1x256xi1> to vector<1x256xi1>
      %57 = vector.broadcast %56 : vector<1x256xi1> to vector<8x256xi1>
      %58 = arith.select %57, %54, %55 : vector<8x256xi1>, vector<8x256xf32>
      %59 = vector.extract_strided_slice %42 {offsets = [0, 17], sizes = [8, 256], strides = [1, 1]} : vector<8x290xf32> to vector<8x256xf32>
      %60 = vector.extract_strided_slice %42 {offsets = [0, 18], sizes = [8, 256], strides = [1, 1]} : vector<8x290xf32> to vector<8x256xf32>
      %cst_24 = arith.constant 0.000000e+00 : f32
      %61 = vector.broadcast %cst_24 : f32 to vector<8x256xf32>
      %62 = vector.shape_cast %20 : vector<1x256xi1> to vector<1x256xi1>
      %63 = vector.broadcast %62 : vector<1x256xi1> to vector<8x256xi1>
      %64 = arith.select %63, %60, %61 : vector<8x256xi1>, vector<8x256xf32>
      %65 = vector.extract_strided_slice %42 {offsets = [0, 32], sizes = [8, 256], strides = [1, 1]} : vector<8x290xf32> to vector<8x256xf32>
      %cst_25 = arith.constant 0.000000e+00 : f32
      %66 = vector.broadcast %cst_25 : f32 to vector<8x256xf32>
      %67 = vector.shape_cast %18 : vector<1x256xi1> to vector<1x256xi1>
      %68 = vector.broadcast %67 : vector<1x256xi1> to vector<8x256xi1>
      %69 = arith.select %68, %65, %66 : vector<8x256xi1>, vector<8x256xf32>
      %70 = vector.extract_strided_slice %42 {offsets = [0, 33], sizes = [8, 256], strides = [1, 1]} : vector<8x290xf32> to vector<8x256xf32>
      %71 = vector.extract_strided_slice %42 {offsets = [0, 34], sizes = [8, 256], strides = [1, 1]} : vector<8x290xf32> to vector<8x256xf32>
      %cst_26 = arith.constant 0.000000e+00 : f32
      %72 = vector.broadcast %cst_26 : f32 to vector<8x256xf32>
      %73 = vector.shape_cast %20 : vector<1x256xi1> to vector<1x256xi1>
      %74 = vector.broadcast %73 : vector<1x256xi1> to vector<8x256xi1>
      %75 = arith.select %74, %71, %72 : vector<8x256xi1>, vector<8x256xf32>
      %76 = tpu.concatenate %47, %48, %53, %58, %59, %64, %69, %70, %75 in 0 : vector<8x256xf32>, vector<8x256xf32>, vector<8x256xf32>, vector<8x256xf32>, vector<8x256xf32>, vector<8x256xf32>, vector<8x256xf32>, vector<8x256xf32>, vector<8x256xf32> -> vector<72x256xf32>
      %cst_27 = arith.constant dense<0.000000e+00> : vector<8x256xf32>
      %77 = tpu.matmul %40, %76, %cst_27 {dimension_numbers = #tpu.dot_dimension_numbers<[1], [0], [0], [1], [0, 0, 1, 1], [], []>} : vector<8x72xf32>, vector<72x256xf32>, vector<8x256xf32> -> vector<8x256xf32>
      %78 = arith.index_cast %arg1 : i32 to index
      %c0_28 = arith.constant 0 : index
      %c0_29 = arith.constant 0 : index
      %79 = vector.load %arg10[%78, %c0_28, %c0_29] : memref<2x8x256xf32, #tpu.memory_space<vmem>>, vector<1x8x256xf32>
      %80 = vector.shape_cast %79 : vector<1x8x256xf32> to vector<8x256xf32>
      %81 = vector.shape_cast %77 : vector<8x256xf32> to vector<1x8x256xf32>
      tpu.vector_store %arg10[%78, %c0_28, %c0_29], %81 {strides = array<i32>} : memref<2x8x256xf32, #tpu.memory_space<vmem>>, vector<1x8x256xf32>,
      %c0_30 = arith.constant 0 : index
      %c0_31 = arith.constant 0 : index
      %c0_32 = arith.constant 0 : index
      %82 = vector.load %arg9[%c0_30, %c0_31, %c0_32] : memref<1x8x256xf32, #tpu.memory_space<vmem>>, vector<1x8x256xf32>
      %83 = vector.shape_cast %82 : vector<1x8x256xf32> to vector<8x256xf32>
      %84 = vector.shape_cast %77 : vector<8x256xf32> to vector<1x8x256xf32>
      tpu.vector_store %arg9[%c0_30, %c0_31, %c0_32], %84 {strides = array<i32>} : memref<1x8x256xf32, #tpu.memory_space<vmem>>, vector<1x8x256xf32>,
      %c0_33 = arith.constant 0 : index
      %c0_34 = arith.constant 0 : index
      %85 = vector.load %arg11[%c0_33, %c0_34] : memref<8x1xf32, #tpu.memory_space<vmem>>, vector<8x1xf32>
      %cst_35 = arith.constant dense<0.000000e+00> : vector<8xf32>
      %86 = vector.multi_reduction <add>, %77, %cst_35 [1] : vector<8x256xf32> to vector<8xf32>
      %87 = vector.shape_cast %86 : vector<8xf32> to vector<8x1xf32>
      %88 = arith.addf %85, %87 : vector<8x1xf32>
      %c0_36 = arith.constant 0 : index
      %c0_37 = arith.constant 0 : index
      %89 = vector.load %arg11[%c0_36, %c0_37] : memref<8x1xf32, #tpu.memory_space<vmem>>, vector<8x1xf32>
      tpu.vector_store %arg11[%c0_36, %c0_37], %88 {strides = array<i32>} : memref<8x1xf32, #tpu.memory_space<vmem>>, vector<8x1xf32>,
      %c0_38 = arith.constant 0 : index
      %c0_39 = arith.constant 0 : index
      %90 = vector.load %arg12[%c0_38, %c0_39] : memref<8x1xf32, #tpu.memory_space<vmem>>, vector<8x1xf32>
      %91 = arith.mulf %77, %77 : vector<8x256xf32>
      %cst_40 = arith.constant dense<0.000000e+00> : vector<8xf32>
      %92 = vector.multi_reduction <add>, %91, %cst_40 [1] : vector<8x256xf32> to vector<8xf32>
      %93 = vector.shape_cast %92 : vector<8xf32> to vector<8x1xf32>
      %94 = arith.addf %90, %93 : vector<8x1xf32>
      %c0_41 = arith.constant 0 : index
      %c0_42 = arith.constant 0 : index
      %95 = vector.load %arg12[%c0_41, %c0_42] : memref<8x1xf32, #tpu.memory_space<vmem>>, vector<8x1xf32>
      tpu.vector_store %arg12[%c0_41, %c0_42], %94 {strides = array<i32>} : memref<8x1xf32, #tpu.memory_space<vmem>>, vector<8x1xf32>,
    } else {
    }
    %c1_i32_6 = arith.constant 1 : i32
    %24 = arith.cmpi eq, %arg0, %c1_i32_6 : i32
    %25 = arith.extui %24 : i1 to i32
    %c0_i32_7 = arith.constant 0 : i32
    %26 = arith.cmpi ne, %25, %c0_i32_7 : i32
    scf.if %26 {
      %c0_i32_9 = arith.constant 0 : i32
      %30 = arith.cmpi eq, %arg1, %c0_i32_9 : i32
      %31 = arith.extui %30 : i1 to i32
      %c0_i32_10 = arith.constant 0 : i32
      %32 = arith.cmpi ne, %31, %c0_i32_10 : i32
      scf.if %32 {
        %c0_42 = arith.constant 0 : index
        %c0_43 = arith.constant 0 : index
        %101 = vector.load %arg11[%c0_42, %c0_43] : memref<8x1xf32, #tpu.memory_space<vmem>>, vector<8x1xf32>
        %cst_44 = arith.constant 0.001953125 : f32
        %102 = vector.broadcast %cst_44 : f32 to vector<8x1xf32>
        %103 = arith.mulf %101, %102 : vector<8x1xf32>
        %c0_45 = arith.constant 0 : index
        %c0_46 = arith.constant 0 : index
        %104 = vector.load %arg12[%c0_45, %c0_46] : memref<8x1xf32, #tpu.memory_space<vmem>>, vector<8x1xf32>
        %cst_47 = arith.constant 0.001953125 : f32
        %105 = vector.broadcast %cst_47 : f32 to vector<8x1xf32>
        %106 = arith.mulf %104, %105 : vector<8x1xf32>
        %107 = arith.mulf %103, %103 : vector<8x1xf32>
        %108 = arith.subf %106, %107 : vector<8x1xf32>
        %cst_48 = arith.constant 9.99999974E-6 : f32
        %109 = vector.broadcast %cst_48 : f32 to vector<8x1xf32>
        %110 = arith.addf %108, %109 : vector<8x1xf32>
        %111 = math.rsqrt %110 : vector<8x1xf32>
        %c0_49 = arith.constant 0 : index
        %c0_50 = arith.constant 0 : index
        %112 = vector.load %arg7[%c0_49, %c0_50] : memref<8x2xf32, #tpu.memory_space<vmem>>, vector<8x1xf32>
        %113 = arith.mulf %111, %112 : vector<8x1xf32>
        %c0_51 = arith.constant 0 : index
        %c0_52 = arith.constant 0 : index
        %114 = vector.load %arg13[%c0_51, %c0_52] : memref<8x1xf32, #tpu.memory_space<vmem>>, vector<8x1xf32>
        tpu.vector_store %arg13[%c0_51, %c0_52], %113 {strides = array<i32>} : memref<8x1xf32, #tpu.memory_space<vmem>>, vector<8x1xf32>,
        %c0_53 = arith.constant 0 : index
        %c0_54 = arith.constant 0 : index
        %115 = vector.load %arg8[%c0_53, %c0_54] : memref<8x2xf32, #tpu.memory_space<vmem>>, vector<8x1xf32>
        %116 = arith.mulf %103, %113 : vector<8x1xf32>
        %117 = arith.subf %115, %116 : vector<8x1xf32>
        %c0_55 = arith.constant 0 : index
        %c0_56 = arith.constant 0 : index
        %118 = vector.load %arg14[%c0_55, %c0_56] : memref<8x1xf32, #tpu.memory_space<vmem>>, vector<8x1xf32>
        tpu.vector_store %arg14[%c0_55, %c0_56], %117 {strides = array<i32>} : memref<8x1xf32, #tpu.memory_space<vmem>>, vector<8x1xf32>,
        %cst_57 = arith.constant 0.000000e+00 : f32
        %119 = vector.broadcast %cst_57 : f32 to vector<8x1xf32>
        %c0_58 = arith.constant 0 : index
        %c0_59 = arith.constant 0 : index
        %120 = vector.load %arg11[%c0_58, %c0_59] : memref<8x1xf32, #tpu.memory_space<vmem>>, vector<8x1xf32>
        tpu.vector_store %arg11[%c0_58, %c0_59], %119 {strides = array<i32>} : memref<8x1xf32, #tpu.memory_space<vmem>>, vector<8x1xf32>,
        %cst_60 = arith.constant 0.000000e+00 : f32
        %121 = vector.broadcast %cst_60 : f32 to vector<8x1xf32>
        %c0_61 = arith.constant 0 : index
        %c0_62 = arith.constant 0 : index
        %122 = vector.load %arg12[%c0_61, %c0_62] : memref<8x1xf32, #tpu.memory_space<vmem>>, vector<8x1xf32>
        tpu.vector_store %arg12[%c0_61, %c0_62], %121 {strides = array<i32>} : memref<8x1xf32, #tpu.memory_space<vmem>>, vector<8x1xf32>,
      } else {
      }
      %33 = arith.index_cast %arg1 : i32 to index
      %c0 = arith.constant 0 : index
      %c0_11 = arith.constant 0 : index
      %34 = vector.load %arg10[%33, %c0, %c0_11] : memref<2x8x256xf32, #tpu.memory_space<vmem>>, vector<1x8x256xf32>
      %35 = vector.shape_cast %34 : vector<1x8x256xf32> to vector<8x256xf32>
      %c0_12 = arith.constant 0 : index
      %c0_13 = arith.constant 0 : index
      %36 = vector.load %arg13[%c0_12, %c0_13] : memref<8x1xf32, #tpu.memory_space<vmem>>, vector<8x1xf32>
      %37 = vector.broadcast %36 : vector<8x1xf32> to vector<8x256xf32>
      %38 = arith.mulf %35, %37 : vector<8x256xf32>
      %c0_14 = arith.constant 0 : index
      %c0_15 = arith.constant 0 : index
      %39 = vector.load %arg14[%c0_14, %c0_15] : memref<8x1xf32, #tpu.memory_space<vmem>>, vector<8x1xf32>
      %40 = vector.broadcast %39 : vector<8x1xf32> to vector<8x256xf32>
      %41 = arith.addf %38, %40 : vector<8x256xf32>
      %cst = arith.constant 0.000000e+00 : f32
      %42 = vector.broadcast %cst : f32 to vector<8x256xf32>
      %43 = arith.maximumf %41, %42 : vector<8x256xf32>
      %c0_16 = arith.constant 0 : index
      %c0_17 = arith.constant 0 : index
      %c0_18 = arith.constant 0 : index
      %44 = vector.load %arg6[%c0_16, %c0_17, %c0_18] : memref<1x8x72xf32, #tpu.memory_space<vmem>>, vector<1x8x72xf32>
      %45 = vector.shape_cast %44 : vector<1x8x72xf32> to vector<8x72xf32>
      %cst_19 = arith.constant 0.000000e+00 : f32
      %46 = vector.broadcast %cst_19 : f32 to vector<8x17xf32>
      %47 = tpu.concatenate %46, %43, %46 in 1 : vector<8x17xf32>, vector<8x256xf32>, vector<8x17xf32> -> vector<8x290xf32>
      %48 = vector.extract_strided_slice %47 {offsets = [0, 0], sizes = [8, 256], strides = [1, 1]} : vector<8x290xf32> to vector<8x256xf32>
      %cst_20 = arith.constant 0.000000e+00 : f32
      %49 = vector.broadcast %cst_20 : f32 to vector<8x256xf32>
      %50 = vector.shape_cast %18 : vector<1x256xi1> to vector<1x256xi1>
      %51 = vector.broadcast %50 : vector<1x256xi1> to vector<8x256xi1>
      %52 = arith.select %51, %48, %49 : vector<8x256xi1>, vector<8x256xf32>
      %53 = vector.extract_strided_slice %47 {offsets = [0, 1], sizes = [8, 256], strides = [1, 1]} : vector<8x290xf32> to vector<8x256xf32>
      %54 = vector.extract_strided_slice %47 {offsets = [0, 2], sizes = [8, 256], strides = [1, 1]} : vector<8x290xf32> to vector<8x256xf32>
      %cst_21 = arith.constant 0.000000e+00 : f32
      %55 = vector.broadcast %cst_21 : f32 to vector<8x256xf32>
      %56 = vector.shape_cast %20 : vector<1x256xi1> to vector<1x256xi1>
      %57 = vector.broadcast %56 : vector<1x256xi1> to vector<8x256xi1>
      %58 = arith.select %57, %54, %55 : vector<8x256xi1>, vector<8x256xf32>
      %59 = vector.extract_strided_slice %47 {offsets = [0, 16], sizes = [8, 256], strides = [1, 1]} : vector<8x290xf32> to vector<8x256xf32>
      %cst_22 = arith.constant 0.000000e+00 : f32
      %60 = vector.broadcast %cst_22 : f32 to vector<8x256xf32>
      %61 = vector.shape_cast %18 : vector<1x256xi1> to vector<1x256xi1>
      %62 = vector.broadcast %61 : vector<1x256xi1> to vector<8x256xi1>
      %63 = arith.select %62, %59, %60 : vector<8x256xi1>, vector<8x256xf32>
      %64 = vector.extract_strided_slice %47 {offsets = [0, 17], sizes = [8, 256], strides = [1, 1]} : vector<8x290xf32> to vector<8x256xf32>
      %65 = vector.extract_strided_slice %47 {offsets = [0, 18], sizes = [8, 256], strides = [1, 1]} : vector<8x290xf32> to vector<8x256xf32>
      %cst_23 = arith.constant 0.000000e+00 : f32
      %66 = vector.broadcast %cst_23 : f32 to vector<8x256xf32>
      %67 = vector.shape_cast %20 : vector<1x256xi1> to vector<1x256xi1>
      %68 = vector.broadcast %67 : vector<1x256xi1> to vector<8x256xi1>
      %69 = arith.select %68, %65, %66 : vector<8x256xi1>, vector<8x256xf32>
      %70 = vector.extract_strided_slice %47 {offsets = [0, 32], sizes = [8, 256], strides = [1, 1]} : vector<8x290xf32> to vector<8x256xf32>
      %cst_24 = arith.constant 0.000000e+00 : f32
      %71 = vector.broadcast %cst_24 : f32 to vector<8x256xf32>
      %72 = vector.shape_cast %18 : vector<1x256xi1> to vector<1x256xi1>
      %73 = vector.broadcast %72 : vector<1x256xi1> to vector<8x256xi1>
      %74 = arith.select %73, %70, %71 : vector<8x256xi1>, vector<8x256xf32>
      %75 = vector.extract_strided_slice %47 {offsets = [0, 33], sizes = [8, 256], strides = [1, 1]} : vector<8x290xf32> to vector<8x256xf32>
      %76 = vector.extract_strided_slice %47 {offsets = [0, 34], sizes = [8, 256], strides = [1, 1]} : vector<8x290xf32> to vector<8x256xf32>
      %cst_25 = arith.constant 0.000000e+00 : f32
      %77 = vector.broadcast %cst_25 : f32 to vector<8x256xf32>
      %78 = vector.shape_cast %20 : vector<1x256xi1> to vector<1x256xi1>
      %79 = vector.broadcast %78 : vector<1x256xi1> to vector<8x256xi1>
      %80 = arith.select %79, %76, %77 : vector<8x256xi1>, vector<8x256xf32>
      %81 = tpu.concatenate %52, %53, %58, %63, %64, %69, %74, %75, %80 in 0 : vector<8x256xf32>, vector<8x256xf32>, vector<8x256xf32>, vector<8x256xf32>, vector<8x256xf32>, vector<8x256xf32>, vector<8x256xf32>, vector<8x256xf32>, vector<8x256xf32> -> vector<72x256xf32>
      %cst_26 = arith.constant dense<0.000000e+00> : vector<8x256xf32>
      %82 = tpu.matmul %45, %81, %cst_26 {dimension_numbers = #tpu.dot_dimension_numbers<[1], [0], [0], [1], [0, 0, 1, 1], [], []>} : vector<8x72xf32>, vector<72x256xf32>, vector<8x256xf32> -> vector<8x256xf32>
      %83 = arith.index_cast %arg1 : i32 to index
      %c0_27 = arith.constant 0 : index
      %c0_28 = arith.constant 0 : index
      %84 = vector.load %arg10[%83, %c0_27, %c0_28] : memref<2x8x256xf32, #tpu.memory_space<vmem>>, vector<1x8x256xf32>
      %85 = vector.shape_cast %84 : vector<1x8x256xf32> to vector<8x256xf32>
      %86 = vector.shape_cast %82 : vector<8x256xf32> to vector<1x8x256xf32>
      tpu.vector_store %arg10[%83, %c0_27, %c0_28], %86 {strides = array<i32>} : memref<2x8x256xf32, #tpu.memory_space<vmem>>, vector<1x8x256xf32>,
      %c0_29 = arith.constant 0 : index
      %c0_30 = arith.constant 0 : index
      %c0_31 = arith.constant 0 : index
      %87 = vector.load %arg9[%c0_29, %c0_30, %c0_31] : memref<1x8x256xf32, #tpu.memory_space<vmem>>, vector<1x8x256xf32>
      %88 = vector.shape_cast %87 : vector<1x8x256xf32> to vector<8x256xf32>
      %89 = vector.shape_cast %82 : vector<8x256xf32> to vector<1x8x256xf32>
      tpu.vector_store %arg9[%c0_29, %c0_30, %c0_31], %89 {strides = array<i32>} : memref<1x8x256xf32, #tpu.memory_space<vmem>>, vector<1x8x256xf32>,
      %c0_32 = arith.constant 0 : index
      %c0_33 = arith.constant 0 : index
      %90 = vector.load %arg11[%c0_32, %c0_33] : memref<8x1xf32, #tpu.memory_space<vmem>>, vector<8x1xf32>
      %cst_34 = arith.constant dense<0.000000e+00> : vector<8xf32>
      %91 = vector.multi_reduction <add>, %82, %cst_34 [1] : vector<8x256xf32> to vector<8xf32>
      %92 = vector.shape_cast %91 : vector<8xf32> to vector<8x1xf32>
      %93 = arith.addf %90, %92 : vector<8x1xf32>
      %c0_35 = arith.constant 0 : index
      %c0_36 = arith.constant 0 : index
      %94 = vector.load %arg11[%c0_35, %c0_36] : memref<8x1xf32, #tpu.memory_space<vmem>>, vector<8x1xf32>
      tpu.vector_store %arg11[%c0_35, %c0_36], %93 {strides = array<i32>} : memref<8x1xf32, #tpu.memory_space<vmem>>, vector<8x1xf32>,
      %c0_37 = arith.constant 0 : index
      %c0_38 = arith.constant 0 : index
      %95 = vector.load %arg12[%c0_37, %c0_38] : memref<8x1xf32, #tpu.memory_space<vmem>>, vector<8x1xf32>
      %96 = arith.mulf %82, %82 : vector<8x256xf32>
      %cst_39 = arith.constant dense<0.000000e+00> : vector<8xf32>
      %97 = vector.multi_reduction <add>, %96, %cst_39 [1] : vector<8x256xf32> to vector<8xf32>
      %98 = vector.shape_cast %97 : vector<8xf32> to vector<8x1xf32>
      %99 = arith.addf %95, %98 : vector<8x1xf32>
      %c0_40 = arith.constant 0 : index
      %c0_41 = arith.constant 0 : index
      %100 = vector.load %arg12[%c0_40, %c0_41] : memref<8x1xf32, #tpu.memory_space<vmem>>, vector<8x1xf32>
      tpu.vector_store %arg12[%c0_40, %c0_41], %99 {strides = array<i32>} : memref<8x1xf32, #tpu.memory_space<vmem>>, vector<8x1xf32>,
    } else {
    }
    %c2_i32 = arith.constant 2 : i32
    %27 = arith.cmpi eq, %arg0, %c2_i32 : i32
    %28 = arith.extui %27 : i1 to i32
    %c0_i32_8 = arith.constant 0 : i32
    %29 = arith.cmpi ne, %28, %c0_i32_8 : i32
    scf.if %29 {
      %c0_i32_9 = arith.constant 0 : i32
      %30 = arith.cmpi eq, %arg1, %c0_i32_9 : i32
      %31 = arith.extui %30 : i1 to i32
      %c0_i32_10 = arith.constant 0 : i32
      %32 = arith.cmpi ne, %31, %c0_i32_10 : i32
      scf.if %32 {
        %c0_19 = arith.constant 0 : index
        %c0_20 = arith.constant 0 : index
        %47 = vector.load %arg11[%c0_19, %c0_20] : memref<8x1xf32, #tpu.memory_space<vmem>>, vector<8x1xf32>
        %cst_21 = arith.constant 0.001953125 : f32
        %48 = vector.broadcast %cst_21 : f32 to vector<8x1xf32>
        %49 = arith.mulf %47, %48 : vector<8x1xf32>
        %c0_22 = arith.constant 0 : index
        %c0_23 = arith.constant 0 : index
        %50 = vector.load %arg12[%c0_22, %c0_23] : memref<8x1xf32, #tpu.memory_space<vmem>>, vector<8x1xf32>
        %cst_24 = arith.constant 0.001953125 : f32
        %51 = vector.broadcast %cst_24 : f32 to vector<8x1xf32>
        %52 = arith.mulf %50, %51 : vector<8x1xf32>
        %53 = arith.mulf %49, %49 : vector<8x1xf32>
        %54 = arith.subf %52, %53 : vector<8x1xf32>
        %cst_25 = arith.constant 9.99999974E-6 : f32
        %55 = vector.broadcast %cst_25 : f32 to vector<8x1xf32>
        %56 = arith.addf %54, %55 : vector<8x1xf32>
        %57 = math.rsqrt %56 : vector<8x1xf32>
        %c0_26 = arith.constant 0 : index
        %c1 = arith.constant 1 : index
        %58 = vector.load %arg7[%c0_26, %c1] : memref<8x2xf32, #tpu.memory_space<vmem>>, vector<8x1xf32>
        %59 = arith.mulf %57, %58 : vector<8x1xf32>
        %c0_27 = arith.constant 0 : index
        %c0_28 = arith.constant 0 : index
        %60 = vector.load %arg13[%c0_27, %c0_28] : memref<8x1xf32, #tpu.memory_space<vmem>>, vector<8x1xf32>
        tpu.vector_store %arg13[%c0_27, %c0_28], %59 {strides = array<i32>} : memref<8x1xf32, #tpu.memory_space<vmem>>, vector<8x1xf32>,
        %c0_29 = arith.constant 0 : index
        %c1_30 = arith.constant 1 : index
        %61 = vector.load %arg8[%c0_29, %c1_30] : memref<8x2xf32, #tpu.memory_space<vmem>>, vector<8x1xf32>
        %62 = arith.mulf %49, %59 : vector<8x1xf32>
        %63 = arith.subf %61, %62 : vector<8x1xf32>
        %c0_31 = arith.constant 0 : index
        %c0_32 = arith.constant 0 : index
        %64 = vector.load %arg14[%c0_31, %c0_32] : memref<8x1xf32, #tpu.memory_space<vmem>>, vector<8x1xf32>
        tpu.vector_store %arg14[%c0_31, %c0_32], %63 {strides = array<i32>} : memref<8x1xf32, #tpu.memory_space<vmem>>, vector<8x1xf32>,
        %cst_33 = arith.constant 0.000000e+00 : f32
        %65 = vector.broadcast %cst_33 : f32 to vector<8x1xf32>
        %c0_34 = arith.constant 0 : index
        %c0_35 = arith.constant 0 : index
        %66 = vector.load %arg11[%c0_34, %c0_35] : memref<8x1xf32, #tpu.memory_space<vmem>>, vector<8x1xf32>
        tpu.vector_store %arg11[%c0_34, %c0_35], %65 {strides = array<i32>} : memref<8x1xf32, #tpu.memory_space<vmem>>, vector<8x1xf32>,
        %cst_36 = arith.constant 0.000000e+00 : f32
        %67 = vector.broadcast %cst_36 : f32 to vector<8x1xf32>
        %c0_37 = arith.constant 0 : index
        %c0_38 = arith.constant 0 : index
        %68 = vector.load %arg12[%c0_37, %c0_38] : memref<8x1xf32, #tpu.memory_space<vmem>>, vector<8x1xf32>
        tpu.vector_store %arg12[%c0_37, %c0_38], %67 {strides = array<i32>} : memref<8x1xf32, #tpu.memory_space<vmem>>, vector<8x1xf32>,
      } else {
      }
      %33 = arith.index_cast %arg1 : i32 to index
      %c0 = arith.constant 0 : index
      %c0_11 = arith.constant 0 : index
      %34 = vector.load %arg10[%33, %c0, %c0_11] : memref<2x8x256xf32, #tpu.memory_space<vmem>>, vector<1x8x256xf32>
      %35 = vector.shape_cast %34 : vector<1x8x256xf32> to vector<8x256xf32>
      %c0_12 = arith.constant 0 : index
      %c0_13 = arith.constant 0 : index
      %36 = vector.load %arg13[%c0_12, %c0_13] : memref<8x1xf32, #tpu.memory_space<vmem>>, vector<8x1xf32>
      %37 = vector.broadcast %36 : vector<8x1xf32> to vector<8x256xf32>
      %38 = arith.mulf %35, %37 : vector<8x256xf32>
      %c0_14 = arith.constant 0 : index
      %c0_15 = arith.constant 0 : index
      %39 = vector.load %arg14[%c0_14, %c0_15] : memref<8x1xf32, #tpu.memory_space<vmem>>, vector<8x1xf32>
      %40 = vector.broadcast %39 : vector<8x1xf32> to vector<8x256xf32>
      %41 = arith.addf %38, %40 : vector<8x256xf32>
      %cst = arith.constant 0.000000e+00 : f32
      %42 = vector.broadcast %cst : f32 to vector<8x256xf32>
      %43 = arith.maximumf %41, %42 : vector<8x256xf32>
      %c0_16 = arith.constant 0 : index
      %c0_17 = arith.constant 0 : index
      %c0_18 = arith.constant 0 : index
      %44 = vector.load %arg9[%c0_16, %c0_17, %c0_18] : memref<1x8x256xf32, #tpu.memory_space<vmem>>, vector<1x8x256xf32>
      %45 = vector.shape_cast %44 : vector<1x8x256xf32> to vector<8x256xf32>
      %46 = vector.shape_cast %43 : vector<8x256xf32> to vector<1x8x256xf32>
      tpu.vector_store %arg9[%c0_16, %c0_17, %c0_18], %46 {strides = array<i32>} : memref<1x8x256xf32, #tpu.memory_space<vmem>>, vector<1x8x256xf32>,
    } else {
    }
    return
  }
  func.func @transform_0(%arg0: i32, %arg1: i32) -> (i32, i32, i32) {
    %c0_i32 = arith.constant 0 : i32
    %0 = arith.cmpi eq, %arg0, %c0_i32 : i32
    %c0_i32_0 = arith.constant 0 : i32
    %1 = arith.select %0, %arg1, %c0_i32_0 : i32
    %c0_i32_1 = arith.constant 0 : i32
    %c0_i32_2 = arith.constant 0 : i32
    %c0_i32_3 = arith.constant 0 : i32
    return %1, %c0_i32_1, %c0_i32_2 : i32, i32, i32
  }
  func.func @transform_1(%arg0: i32, %arg1: i32) -> (i32, i32, i32) {
    %c0_i32 = arith.constant 0 : i32
    %0 = arith.cmpi eq, %arg0, %c0_i32 : i32
    %c0_i32_0 = arith.constant 0 : i32
    %1 = arith.select %0, %arg1, %c0_i32_0 : i32
    %c0_i32_1 = arith.constant 0 : i32
    %c0_i32_2 = arith.constant 0 : i32
    %c0_i32_3 = arith.constant 0 : i32
    return %1, %c0_i32_1, %c0_i32_2 : i32, i32, i32
  }
  func.func @transform_2(%arg0: i32, %arg1: i32) -> (i32, i32) {
    %c0_i32 = arith.constant 0 : i32
    %c0_i32_0 = arith.constant 0 : i32
    %c0_i32_1 = arith.constant 0 : i32
    return %c0_i32, %c0_i32_0 : i32, i32
  }
  func.func @transform_3(%arg0: i32, %arg1: i32) -> (i32, i32) {
    %c0_i32 = arith.constant 0 : i32
    %c0_i32_0 = arith.constant 0 : i32
    %c0_i32_1 = arith.constant 0 : i32
    return %c0_i32, %c0_i32_0 : i32, i32
  }
  func.func @transform_4(%arg0: i32, %arg1: i32) -> (i32, i32, i32) {
    %c0_i32 = arith.constant 0 : i32
    %c0_i32_0 = arith.constant 0 : i32
    %c0_i32_1 = arith.constant 0 : i32
    %c0_i32_2 = arith.constant 0 : i32
    return %c0_i32, %c0_i32_0, %c0_i32_1 : i32, i32, i32
  }
  func.func @transform_5(%arg0: i32, %arg1: i32) -> (i32, i32) {
    %c0_i32 = arith.constant 0 : i32
    %c0_i32_0 = arith.constant 0 : i32
    %c0_i32_1 = arith.constant 0 : i32
    return %c0_i32, %c0_i32_0 : i32, i32
  }
  func.func @transform_6(%arg0: i32, %arg1: i32) -> (i32, i32) {
    %c0_i32 = arith.constant 0 : i32
    %c0_i32_0 = arith.constant 0 : i32
    %c0_i32_1 = arith.constant 0 : i32
    return %c0_i32, %c0_i32_0 : i32, i32
  }
  func.func @transform_7(%arg0: i32, %arg1: i32) -> (i32, i32, i32) {
    %c0_i32 = arith.constant 0 : i32
    %c0_i32_0 = arith.constant 0 : i32
    %c0_i32_1 = arith.constant 0 : i32
    return %arg1, %c0_i32, %c0_i32_0 : i32, i32, i32
  }
}

</mosaic_0001>

<llo_original>
// kernel: tpu_custom_call.1
$region0: #{tpu_custom_call.1}
  #allocation0 [shape = 'u32[]', space=smem, size = 0x4, offset = 0x4, fixed_abs, tag = 'smem constant byte address 0x4 - core index']
  #allocation1 [shape = 'u32[144,128]{1,0:T(1,128)}', space=vmem, size = 0x12000, scoped, tag = 'internal scratch']
  #allocation2 [shape = 'f32[2,8,256]{2,1,0:T(8,128)}', space=vmem, size = 0x4000, scoped, tag = 'scratch operand']
  #allocation3 [shape = 'f32[8,1]{1,0:T(8,128)}', space=vmem, size = 0x1000, scoped, tag = 'scratch operand']
  #allocation4 [shape = 'f32[8,1]{1,0:T(8,128)}', space=vmem, size = 0x1000, scoped, tag = 'scratch operand']
  #allocation5 [shape = 'f32[8,1]{1,0:T(8,128)}', space=vmem, size = 0x1000, scoped, tag = 'scratch operand']
  #allocation6 [shape = 'f32[8,1]{1,0:T(8,128)}', space=vmem, size = 0x1000, scoped, tag = 'scratch operand']
  %s0 = inlined_call_operand.hbm [shape: f32[2,4,64], index: 0, kind: input, shape index: {}]
  %s1 = inlined_call_operand.vmem [shape: f32[2,4,256], index: 1, kind: input, shape index: {}]
  %s2 = inlined_call_operand.hbm [shape: f32[64,256], index: 2, kind: input, shape index: {}]
  %s3 = inlined_call_operand.vmem [shape: f32[8,72], index: 3, kind: input, shape index: {}]
  %s4 = inlined_call_operand.vmem [shape: f32[1,8,72], index: 4, kind: input, shape index: {}]
  %s5 = inlined_call_operand.vmem [shape: f32[8,2], index: 5, kind: input, shape index: {}]
  %s6 = inlined_call_operand.vmem [shape: f32[8,2], index: 6, kind: input, shape index: {}]
  %s7 = inlined_call_operand.hbm [shape: f32[2,8,256], index: 7, kind: output, shape index: {}]
  %s8 = sld [smem:[#allocation0]]
  $region93: #{tpu_custom_call.1} parent=0
    _
  %s10 = ssub.s32 1, %s8
  %s11 = scalar_select 0, %s10, %s8
  $region1: #{tpu_custom_call.1} parent=0
    #allocation7 [shape = 'u8[4096]{0}', space=vmem, size = 0x1000, scoped, tag = 'input window, operand 0']
    #allocation8 [shape = 's32[2]{0}', space=sflag, size = 0x8, scoped, tag = 'scoped memory for tpu_custom_call.1']
    #allocation9 [shape = 's32[2]{0}', space=sflag, size = 0x8, scoped, tag = 'scoped memory for tpu_custom_call.1']
    #allocation10 [shape = 'u8[65536]{0}', space=vmem, size = 0x10000, scoped, tag = 'input window, operand 2, single buffered']
    #allocation11 [shape = 's32[1]{0}', space=sflag, size = 0x4, scoped, tag = 'scoped memory for tpu_custom_call.1']
    #allocation12 [shape = 'u8[16384]{0}', space=vmem, size = 0x4000, scoped, tag = 'output window, operand 0']
    %12 = vsyncpa [#allocation8], 0
    %s13 = scalar_lea.sflag [#allocation8], 1
    %14 = vsyncpa %s13, 0
    %15 = vsyncpa [#allocation11], 0
    %16 = vsyncpa [#allocation9], 0
    %s17 = scalar_lea.sflag [#allocation9], 1
    %18 = vsyncpa %s17, 0
    loop: start=0, step=1, limit=8
    $region2: #{tpu_custom_call.1} parent=1 // loop_pre_header
      _
    $region3: #{tpu_custom_call.1} parent=1 // loop_header
      %s20 = sphi 0, %s24
      %p21 = scmp.ge.s32.totalorder %s20, 8
      %s27 = sphi 0, %s39
      %s28 = sphi 0, %s35
      %s29 = sphi 0, %s27
      %s30 = sphi 0, %s28
      %s31 = sphi 0, %s29
      %s32 = sphi 0, %s30
      %s46 = sphi 0, %s48
      %s49 = sphi 0, %s46
      %s50 = sphi 0, %s49
      %s66 = sphi 0, %s50
      %s76 = sphi 0, %s78
      %s79 = sphi 0, %s76
      %s80 = sphi 0, %s79
      %s96 = sphi 0, %s80
      %s100 = sphi 0, %s100
      %s102 = sphi 0, %s100
      %s103 = sphi 0, %s102
      %s117 = sphi 0, %s103
      %s121 = sphi 0, %s121
      %s123 = sphi 0, %s121
      %s124 = sphi 0, %s123
      %s138 = sphi 0, %s124
      %s142 = sphi 0, %s142
      %s144 = sphi 0, %s142
      %s145 = sphi 0, %s144
      %s159 = sphi 0, %s145
      %s163 = sphi 0, %s163
      %s165 = sphi 0, %s163
      %s166 = sphi 0, %s165
      %s180 = sphi 0, %s166
      %s184 = sphi 0, %s184
      %s186 = sphi 0, %s184
      %s187 = sphi 0, %s186
      %s201 = sphi 0, %s187
      %s207 = sphi 0, %s209
      %s210 = sphi 0, %s207
      %s211 = sphi 0, %s210
      %s227 = sphi 0, %s211
    $region4: #{tpu_custom_call.1} parent=1 // loop_header_branch
      %23 = sbr.rel (%p21) target = $region8
    $region5: #{tpu_custom_call.1} parent=1 // loop_body
      %s25 = ssub.s32 %s20, 1
      %s26 = ssub.s32 %s20, 2
      %s33 = sadd.s32 1, %s28
      %p34 = scmp.ge.s32.totalorder %s33, 2
      %s35 = scalar_select %p34, 0, %s33
      %s36 = sadd.s32 1, %s27
      %s37 = scalar_select %p34, %s36, %s27
      %p38 = scmp.ge.s32.totalorder %s37, 3
      %s39 = scalar_select %p38, 0, %s37
      %p40 = scmp.eq.s32.totalorder %s27, 0
      %s41 = scalar_select %p40, %s28, 0
      %p42 = scmp.eq.s32.totalorder %s39, 0
      %s43 = scalar_select %p42, %s35, 0
      %s44 = ssub.s32 %s41, %s43
      %p45 = scmp.eq.s32.totalorder %s44, 0
      %s47 = sadd.s32 %s46, 1
      %s48 = scalar_select %p45, %s46, %s47
      %p51 = pneg %p45
      %p52 = scmp.eq.s32.totalorder %s20, 5
      %p53 = por %p51, %p52
      %p54 = scmp.ne.s32.totalorder %s46, %s49
      %p55 = scmp.eq.s32.totalorder %s20, 0
      %p56 = por %p54, %p55
      %p57 = scmp.ne.s32.totalorder %s46, %s49
      %p58 = scmp.eq.s32.totalorder %s25, 5
      %p59 = por %p57, %p58
      %p60 = scmp.ne.s32.totalorder %s49, %s50
      %p61 = scmp.eq.s32.totalorder %s25, 0
      %p62 = por %p60, %p61
      %p63 = scmp.ne.s32.totalorder %s49, %s50
      %p64 = scmp.eq.s32.totalorder %s26, 5
      %p65 = por %p63, %p64
      %p67 = scmp.ne.s32.totalorder %s50, %s66
      %p68 = scmp.eq.s32.totalorder %s26, 0
      %p69 = por %p67, %p68
      %p70 = scmp.eq.s32.totalorder %s27, 0
      %s71 = scalar_select %p70, %s28, 0
      %p72 = scmp.eq.s32.totalorder %s39, 0
      %s73 = scalar_select %p72, %s35, 0
      %s74 = ssub.s32 %s71, %s73
      %p75 = scmp.eq.s32.totalorder %s74, 0
      %s77 = sadd.s32 %s76, 1
      %s78 = scalar_select %p75, %s76, %s77
      %p81 = pneg %p75
      %p82 = scmp.eq.s32.totalorder %s20, 5
      %p83 = por %p81, %p82
      %p84 = scmp.ne.s32.totalorder %s76, %s79
      %p85 = scmp.eq.s32.totalorder %s20, 0
      %p86 = por %p84, %p85
      %p87 = scmp.ne.s32.totalorder %s76, %s79
      %p88 = scmp.eq.s32.totalorder %s25, 5
      %p89 = por %p87, %p88
      %p90 = scmp.ne.s32.totalorder %s79, %s80
      %p91 = scmp.eq.s32.totalorder %s25, 0
      %p92 = por %p90, %p91
      %p93 = scmp.ne.s32.totalorder %s79, %s80
      %p94 = scmp.eq.s32.totalorder %s26, 5
      %p95 = por %p93, %p94
      %p97 = scmp.ne.s32.totalorder %s80, %s96
      %p98 = scmp.eq.s32.totalorder %s26, 0
      %p99 = por %p97, %p98
      %s101 = sadd.s32 %s100, 1
      %p104 = scmp.eq.s32.totalorder %s20, 5
      %p105 = scmp.ne.s32.totalorder %s100, %s102
      %p106 = scmp.eq.s32.totalorder %s20, 0
      %p107 = por %p105, %p106
      %p108 = scmp.ne.s32.totalorder %s100, %s102
      %p109 = scmp.eq.s32.totalorder %s25, 5
      %p110 = por %p108, %p109
      %p111 = scmp.ne.s32.totalorder %s102, %s103
      %p112 = scmp.eq.s32.totalorder %s25, 0
      %p113 = por %p111, %p112
      %p114 = scmp.ne.s32.totalorder %s102, %s103
      %p115 = scmp.eq.s32.totalorder %s26, 5
      %p116 = por %p114, %p115
      %p118 = scmp.ne.s32.totalorder %s103, %s117
      %p119 = scmp.eq.s32.totalorder %s26, 0
      %p120 = por %p118, %p119
      %s122 = sadd.s32 %s121, 1
      %p125 = scmp.eq.s32.totalorder %s20, 5
      %p126 = scmp.ne.s32.totalorder %s121, %s123
      %p127 = scmp.eq.s32.totalorder %s20, 0
      %p128 = por %p126, %p127
      %p129 = scmp.ne.s32.totalorder %s121, %s123
      %p130 = scmp.eq.s32.totalorder %s25, 5
      %p131 = por %p129, %p130
      %p132 = scmp.ne.s32.totalorder %s123, %s124
      %p133 = scmp.eq.s32.totalorder %s25, 0
      %p134 = por %p132, %p133
      %p135 = scmp.ne.s32.totalorder %s123, %s124
      %p136 = scmp.eq.s32.totalorder %s26, 5
      %p137 = por %p135, %p136
      %p139 = scmp.ne.s32.totalorder %s124, %s138
      %p140 = scmp.eq.s32.totalorder %s26, 0
      %p141 = por %p139, %p140
      %s143 = sadd.s32 %s142, 1
      %p146 = scmp.eq.s32.totalorder %s20, 5
      %p147 = scmp.ne.s32.totalorder %s142, %s144
      %p148 = scmp.eq.s32.totalorder %s20, 0
      %p149 = por %p147, %p148
      %p150 = scmp.ne.s32.totalorder %s142, %s144
      %p151 = scmp.eq.s32.totalorder %s25, 5
      %p152 = por %p150, %p151
      %p153 = scmp.ne.s32.totalorder %s144, %s145
      %p154 = scmp.eq.s32.totalorder %s25, 0
      %p155 = por %p153, %p154
      %p156 = scmp.ne.s32.totalorder %s144, %s145
      %p157 = scmp.eq.s32.totalorder %s26, 5
      %p158 = por %p156, %p157
      %p160 = scmp.ne.s32.totalorder %s145, %s159
      %p161 = scmp.eq.s32.totalorder %s26, 0
      %p162 = por %p160, %p161
      %s164 = sadd.s32 %s163, 1
      %p167 = scmp.eq.s32.totalorder %s20, 5
      %p168 = scmp.ne.s32.totalorder %s163, %s165
      %p169 = scmp.eq.s32.totalorder %s20, 0
      %p170 = por %p168, %p169
      %p171 = scmp.ne.s32.totalorder %s163, %s165
      %p172 = scmp.eq.s32.totalorder %s25, 5
      %p173 = por %p171, %p172
      %p174 = scmp.ne.s32.totalorder %s165, %s166
      %p175 = scmp.eq.s32.totalorder %s25, 0
      %p176 = por %p174, %p175
      %p177 = scmp.ne.s32.totalorder %s165, %s166
      %p178 = scmp.eq.s32.totalorder %s26, 5
      %p179 = por %p177, %p178
      %p181 = scmp.ne.s32.totalorder %s166, %s180
      %p182 = scmp.eq.s32.totalorder %s26, 0
      %p183 = por %p181, %p182
      %s185 = sadd.s32 %s184, 1
      %p188 = scmp.eq.s32.totalorder %s20, 5
      %p189 = scmp.ne.s32.totalorder %s184, %s186
      %p190 = scmp.eq.s32.totalorder %s20, 0
      %p191 = por %p189, %p190
      %p192 = scmp.ne.s32.totalorder %s184, %s186
      %p193 = scmp.eq.s32.totalorder %s25, 5
      %p194 = por %p192, %p193
      %p195 = scmp.ne.s32.totalorder %s186, %s187
      %p196 = scmp.eq.s32.totalorder %s25, 0
      %p197 = por %p195, %p196
      %p198 = scmp.ne.s32.totalorder %s186, %s187
      %p199 = scmp.eq.s32.totalorder %s26, 5
      %p200 = por %p198, %p199
      %p202 = scmp.ne.s32.totalorder %s187, %s201
      %p203 = scmp.eq.s32.totalorder %s26, 0
      %p204 = por %p202, %p203
      %s205 = ssub.s32 %s28, %s35
      %p206 = scmp.eq.s32.totalorder %s205, 0
      %s208 = sadd.s32 %s207, 1
      %s209 = scalar_select %p206, %s207, %s208
      %p212 = pneg %p206
      %p213 = scmp.eq.s32.totalorder %s20, 5
      %p214 = por %p212, %p213
      %p215 = scmp.ne.s32.totalorder %s207, %s210
      %p216 = scmp.eq.s32.totalorder %s20, 0
      %p217 = por %p215, %p216
      %p218 = scmp.ne.s32.totalorder %s207, %s210
      %p219 = scmp.eq.s32.totalorder %s25, 5
      %p220 = por %p218, %p219
      %p221 = scmp.ne.s32.totalorder %s210, %s211
      %p222 = scmp.eq.s32.totalorder %s25, 0
      %p223 = por %p221, %p222
      %p224 = scmp.ne.s32.totalorder %s210, %s211
      %p225 = scmp.eq.s32.totalorder %s26, 5
      %p226 = por %p224, %p225
      %p228 = scmp.ne.s32.totalorder %s211, %s227
      %p229 = scmp.eq.s32.totalorder %s26, 0
      %p230 = por %p228, %p229
      %p231 = scmp.le.s32.totalorder 1, %s20
      %p232 = scmp.lt.s32.totalorder %s20, 7
      %p233 = pnand %p231, %p232
      %p234 = pneg %p233
      // Predicated region
      $region9: #{tpu_custom_call.1} parent=5 // pred_check
        _
      $region10: #{tpu_custom_call.1} parent=5 // pred_check_branch
        %236 = sbr.rel (%p233) target = $region12
      $region11: #{tpu_custom_call.1} parent=5 // pred_region
        %s237 = ssub.s32 %s20, 1
        // Predicated region
        $region13: #{tpu_custom_call.1} parent=11 // pred_check
          %p238 = pneg %p113
        $region14: #{tpu_custom_call.1} parent=11 // pred_check_branch
          %240 = sbr.rel (%p238) target = $region16
        $region15: #{tpu_custom_call.1} parent=11 // pred_region
          %s242 = ssub.s32 2048, 2048
          %243 = vsyncadd [#allocation11], %s242
          %s244 = sshll.u32 [#allocation10], 4
          %s245 = int_to_ptr.vmem [resolvable:$true] %s244
          %250 = dma.hbm_to_vmem [thread:$0]  %s2, 2048, %s245, [#allocation11], 256, 256, 16
        $region16: #{tpu_custom_call.1} parent=11 // pred_fallthru
          _
        // Predicated region
        $region17: #{tpu_custom_call.1} parent=11 // pred_check
          %p251 = pneg %p134
        $region18: #{tpu_custom_call.1} parent=11 // pred_check_branch
          %253 = sbr.rel (%p251) target = $region20
        $region19: #{tpu_custom_call.1} parent=11 // pred_region
          _
        $region20: #{tpu_custom_call.1} parent=11 // pred_fallthru
          _
        // Predicated region
        $region21: #{tpu_custom_call.1} parent=11 // pred_check
          %p254 = pneg %p155
        $region22: #{tpu_custom_call.1} parent=11 // pred_check_branch
          %256 = sbr.rel (%p254) target = $region24
        $region23: #{tpu_custom_call.1} parent=11 // pred_region
          _
        $region24: #{tpu_custom_call.1} parent=11 // pred_fallthru
          _
        // Predicated region
        $region25: #{tpu_custom_call.1} parent=11 // pred_check
          %p257 = pneg %p176
        $region26: #{tpu_custom_call.1} parent=11 // pred_check_branch
          %259 = sbr.rel (%p257) target = $region28
        $region27: #{tpu_custom_call.1} parent=11 // pred_region
          _
        $region28: #{tpu_custom_call.1} parent=11 // pred_fallthru
          _
        // Predicated region
        $region29: #{tpu_custom_call.1} parent=11 // pred_check
          %p260 = pneg %p197
        $region30: #{tpu_custom_call.1} parent=11 // pred_check_branch
          %262 = sbr.rel (%p260) target = $region32
        $region31: #{tpu_custom_call.1} parent=11 // pred_region
          _
        $region32: #{tpu_custom_call.1} parent=11 // pred_fallthru
          _
      $region12: #{tpu_custom_call.1} parent=5 // pred_fallthru
        _
      %p263 = scmp.lt.s32.totalorder %s20, 6
      // Predicated region
      $region33: #{tpu_custom_call.1} parent=5 // pred_check
        %p264 = pneg %p263
      $region34: #{tpu_custom_call.1} parent=5 // pred_check_branch
        %266 = sbr.rel (%p264) target = $region36
      $region35: #{tpu_custom_call.1} parent=5 // pred_region
        // Predicated region
        $region37: #{tpu_custom_call.1} parent=35 // pred_check
          %p267 = pneg %p56
        $region38: #{tpu_custom_call.1} parent=35 // pred_check_branch
          %269 = sbr.rel (%p267) target = $region40
        $region39: #{tpu_custom_call.1} parent=35 // pred_region
          %s270 = sand.u32 %s46, 1
          %s271 = scalar_lea.sflag [#allocation8], %s270
          %s272 = sand.u32 %s46, 1
          %s273 = smul.addr %s272, 4
          %s274 = scalar_lea.vmem [#allocation7], %s273
          %p275 = scmp.eq.s32.totalorder %s27, 0
          %s276 = scalar_select %p275, %s28, 0
          %s278 = ssub.s32 64, 64
          %279 = vsyncadd %s271, %s278
          %s280 = smul.addr %s276, 64
          %s281 = scalar_lea.hbm %s0, %s280
          %s283 = sshll.u32 %s274, 4
          %s284 = int_to_ptr.vmem [resolvable:$true] %s283
          %286 = dma.hbm_to_vmem [thread:$0]  %s281, 64, %s284, %s271
        $region40: #{tpu_custom_call.1} parent=35 // pred_fallthru
          _
        // Predicated region
        $region41: #{tpu_custom_call.1} parent=35 // pred_check
          %p287 = pneg %p86
        $region42: #{tpu_custom_call.1} parent=35 // pred_check_branch
          %289 = sbr.rel (%p287) target = $region44
        $region43: #{tpu_custom_call.1} parent=35 // pred_region
          %p290 = scmp.eq.s32.totalorder %s27, 0
          %s291 = scalar_select %p290, %s28, 0
          %p292 = scmp.lt.s32.totalorder %s291, 1
          %s293 = scalar_select %p292, %s291, 1
          %s294 = smul.addr %s293, 2
          %s295 = smul.addr %s294, 4
          %s296 = scalar_lea.vmem %s1, %s295
          %p297 = scmp.eq.s32.totalorder %s27, 0
          %s298 = scalar_select %p297, %s28, 0
        $region44: #{tpu_custom_call.1} parent=35 // pred_fallthru
          _
      $region36: #{tpu_custom_call.1} parent=5 // pred_fallthru
        _
      %p299 = scmp.le.s32.totalorder 1, %s20
      %p300 = scmp.lt.s32.totalorder %s20, 7
      %p301 = pnand %p299, %p300
      %p302 = pneg %p301
      // Predicated region
      $region45: #{tpu_custom_call.1} parent=5 // pred_check
        _
      $region46: #{tpu_custom_call.1} parent=5 // pred_check_branch
        %304 = sbr.rel (%p301) target = $region48
      $region47: #{tpu_custom_call.1} parent=5 // pred_region
        %s305 = ssub.s32 %s20, 1
        %s306 = sand.u32 %s49, 1
        %s307 = scalar_lea.sflag [#allocation8], %s306
        %s308 = sand.u32 %s49, 1
        %s309 = smul.addr %s308, 4
        %s310 = scalar_lea.vmem [#allocation7], %s309
        // Predicated region
        $region49: #{tpu_custom_call.1} parent=47 // pred_check
          %p311 = pneg %p62
        $region50: #{tpu_custom_call.1} parent=47 // pred_check_branch
          %313 = sbr.rel (%p311) target = $region52
        $region51: #{tpu_custom_call.1} parent=47 // pred_region
          %314 = dma.done %s307, 64
        $region52: #{tpu_custom_call.1} parent=47 // pred_fallthru
          _
        // Predicated region
        $region53: #{tpu_custom_call.1} parent=47 // pred_check
          %p315 = pneg %p113
        $region54: #{tpu_custom_call.1} parent=47 // pred_check_branch
          %317 = sbr.rel (%p315) target = $region56
        $region55: #{tpu_custom_call.1} parent=47 // pred_region
          %318 = dma.done [#allocation11], 2048
        $region56: #{tpu_custom_call.1} parent=47 // pred_fallthru
          _
        %s319 = sand.u32 %s49, 1
        %s320 = scalar_lea.sflag [#allocation8], %s319
        %s321 = sand.u32 %s49, 1
        %s322 = smul.addr %s321, 4
        %s323 = scalar_lea.vmem [#allocation7], %s322
        %p324 = pneg %p62
        %p325 = pneg %p59
        %p326 = scmp.eq.s32.totalorder %s29, 0
        %s327 = scalar_select %p326, %s30, 0
        %p328 = scmp.lt.s32.totalorder %s327, 1
        %s329 = scalar_select %p328, %s327, 1
        %s330 = smul.addr %s329, 2
        %s331 = smul.addr %s330, 4
        %s332 = scalar_lea.vmem %s1, %s331
        %p333 = pneg %p92
        %p334 = pneg %p89
        %p335 = pneg %p113
        %p336 = pneg %p110
        %p337 = pneg %p134
        %p338 = pneg %p131
        %p339 = pneg %p155
        %p340 = pneg %p152
        %p341 = pneg %p176
        %p342 = pneg %p173
        %p343 = pneg %p197
        %p344 = pneg %p194
        %p345 = pneg %p223
        %p346 = pneg %p220
        %s347 = sand.u32 %s210, 1
        %s348 = scalar_lea.sflag [#allocation9], %s347
        %s349 = sand.u32 %s210, 1
        %s350 = smul.addr %s349, 16
        %s351 = scalar_lea.vmem [#allocation12], %s350
        %p352 = scmp.eq.s32.totalorder %s29, 0
        %s353 = scalar_select %p352, %s30, 0
        %p354 = scmp.eq.s32.totalorder %s29, 0
        %s355 = scalar_select %p354, %s30, 0
        %p356 = scmp.lt.s32.totalorder %s355, 1
        %s357 = scalar_select %p356, %s355, 1
        %s358 = smul.addr %s357, 2
        %s359 = smul.addr %s358, 4
        %s360 = scalar_lea.vmem %s1, %s359
        %p361 = scmp.eq.s32.totalorder %s29, 0
        %s362 = scalar_select %p361, %s30, 0
        %v363 = vlaneseq
        %v364 = vand.u32 %v363, 127
        %v365 = vadd.s32 %v364, 128
        %vm366 = vcmp.lt.s32.totalorder %v364, 0
        %v367 = vsub.s32 0, %v364
        %v368 = vsel %vm366, %v367, %v364
        %v369 = vshrl.u32 %v368, 4
        %v370 = vand.u32 %v368, 15
        %v371 = vsub.s32 0, %v370
        %v372 = vsel %vm366, %v371, %v370
        %vm373 = vcmp.lt.s32.totalorder %v365, 0
        %v374 = vsub.s32 0, %v365
        %v375 = vsel %vm373, %v374, %v365
        %v376 = vshrl.u32 %v375, 4
        %v377 = vand.u32 %v375, 15
        %v378 = vsub.s32 0, %v377
        %v379 = vsel %vm373, %v378, %v377
        %vm380 = vcmp.ne.s32.totalorder %v372, 0
        %vm381 = vcmp.ne.s32.totalorder %v379, 0
        %vm382 = vcmp.lt.s32.totalorder %v372, 0
        %vm383 = vcmp.lt.s32.totalorder %v379, 0
        %vm384 = vmand %vm382, %vm380
        %vm385 = vmand %vm383, %vm381
        %v386 = vadd.s32 %v372, 16
        %v387 = vadd.s32 %v379, 16
        %v388 = vsel %vm384, %v386, %v372
        %v389 = vsel %vm385, %v387, %v379
        %vm390 = vcmp.ge.s32.totalorder %v388, 1
        %vm391 = vcmp.ge.s32.totalorder %v389, 1
        %vm392 = vcmp.le.s32.totalorder %v388, 14
        %vm393 = vcmp.le.s32.totalorder %v389, 14
        %p394 = scmp.eq.s32.totalorder %s29, 0
        // Predicated region
        $region57: #{tpu_custom_call.1} parent=47 // pred_check
          %p395 = pneg %p394
        $region58: #{tpu_custom_call.1} parent=47 // pred_check_branch
          %397 = sbr.rel (%p395) target = $region60
        $region59: #{tpu_custom_call.1} parent=47 // pred_region
          %p398 = scmp.eq.s32.totalorder %s30, 0
          // Predicated region
          $region61: #{tpu_custom_call.1} parent=59 // pred_check
            %p399 = pneg %p398
          $region62: #{tpu_custom_call.1} parent=59 // pred_check_branch
            %401 = sbr.rel (%p399) target = $region64
          $region63: #{tpu_custom_call.1} parent=59 // pred_region
            %vm402 = vcmask 7168
            %403 = vst.msk [vmem:[#allocation3] sm:$0xff] %vm402, 0.0
            %404 = vst.msk [vmem:[#allocation4] sm:$0xff] %vm402, 0.0
          $region64: #{tpu_custom_call.1} parent=59 // pred_fallthru
            _
          %v405 = vld [vmem:[%s310] sm:$0xf]
          %v406 = vld [vmem:[#allocation10] sm:$0xff]
          %v407 = vld [vmem:[#allocation10 + $0x8] sm:$0xff]
          %v408 = vld [vmem:[#allocation10 + $0x10] sm:$0xff]
          %v409 = vld [vmem:[#allocation10 + $0x18] sm:$0xff]
          %v410 = vld [vmem:[#allocation10 + $0x20] sm:$0xff]
          %v411 = vld [vmem:[#allocation10 + $0x28] sm:$0xff]
          %v412 = vld [vmem:[#allocation10 + $0x30] sm:$0xff]
          %v413 = vld [vmem:[#allocation10 + $0x38] sm:$0xff]
          %v414 = vld [vmem:[#allocation10 + $0x40] sm:$0xff]
          %v415 = vld [vmem:[#allocation10 + $0x48] sm:$0xff]
          %v416 = vld [vmem:[#allocation10 + $0x50] sm:$0xff]
          %v417 = vld [vmem:[#allocation10 + $0x58] sm:$0xff]
          %v418 = vld [vmem:[#allocation10 + $0x60] sm:$0xff]
          %v419 = vld [vmem:[#allocation10 + $0x68] sm:$0xff]
          %v420 = vld [vmem:[#allocation10 + $0x70] sm:$0xff]
          %v421 = vld [vmem:[#allocation10 + $0x78] sm:$0xff]
          %vm422 = vcmask 523264
          %v424 = vsel %vm422, %v405, 0
          %426 = vmatprep.subr.mxu0 %v407
          %427 = vmatpush1.msra.mxu0 %v406
          %428 = vmatprep.subr.mxu0 %v409
          %429 = vmatpush1.msra.mxu0 %v408
          %430 = vmatprep.subr.mxu0 %v411
          %431 = vmatpush1.msra.mxu0 %v410
          %432 = vmatprep.subr.mxu0 %v413
          %433 = vmatpush1.msra.mxu0 %v412
          %434 = vmatprep.subr.mxu0 %v415
          %435 = vmatpush1.msra.mxu0 %v414
          %436 = vmatprep.subr.mxu0 %v417
          %437 = vmatpush1.msra.mxu0 %v416
          %438 = vmatprep.subr.mxu0 %v419
          %439 = vmatpush1.msra.mxu0 %v418
          %440 = vmatprep.subr.mxu0 %v421
          %441 = vmatpush1.msra.mxu0 %v420
          %442 = vmatprep.subr.mxu0 0.0
          %443 = vmatpush1.msra.mxu0 0.0
          %444 = vmatprep.subr.mxu0 0.0
          %445 = vmatpush1.msra.mxu0 0.0
          %446 = vmatprep.subr.mxu0 0.0
          %447 = vmatpush1.msra.mxu0 0.0
          %448 = vmatprep.subr.mxu0 0.0
          %449 = vmatpush1.msra.mxu0 0.0
          %450 = vmatprep.subr.mxu0 0.0
          %451 = vmatpush1.msra.mxu0 0.0
          %452 = vmatprep.subr.mxu0 0.0
          %453 = vmatpush1.msra.mxu0 0.0
          %454 = vmatprep.subr.mxu0 0.0
          %455 = vmatpush1.msra.mxu0 0.0
          %456 = vmatprep.subr.mxu0 0.0
          %457 = vmatpush1.msra.mxu0 0.0
          %458 = vmatprep.subr.mxu0 0.0
          %459 = vmatpush1.msra.mxu0 0.0
          %460 = vmatprep.subr.mxu0 0.0
          %461 = vmatpush1.msra.mxu0 0.0
          %462 = vmatprep.subr.mxu0 0.0
          %463 = vmatpush1.msra.mxu0 0.0
          %464 = vmatprep.subr.mxu0 0.0
          %465 = vmatpush1.msra.mxu0 0.0
          %466 = vmatprep.subr.mxu0 0.0
          %467 = vmatpush1.msra.mxu0 0.0
          %468 = vmatprep.subr.mxu0 0.0
          %469 = vmatpush1.msra.mxu0 0.0
          %470 = vmatprep.subr.mxu0 0.0
          %471 = vmatpush1.msra.mxu0 0.0
          %472 = vmatprep.subr.mxu0 0.0
          %473 = vmatpush1.msra.mxu0 0.0
          %474 = vmatprep.subr.mxu0 0.0
          %475 = vmatpush1.msra.mxu0 0.0
          %476 = vmatprep.subr.mxu0 0.0
          %477 = vmatpush1.msra.mxu0 0.0
          %478 = vmatprep.subr.mxu0 0.0
          %479 = vmatpush1.msra.mxu0 0.0
          %480 = vmatprep.subr.mxu0 0.0
          %481 = vmatpush1.msra.mxu0 0.0
          %482 = vmatprep.subr.mxu0 0.0
          %483 = vmatpush1.msra.mxu0 0.0
          %484 = vmatprep.subr.mxu0 0.0
          %485 = vmatpush1.msra.mxu0 0.0
          %486 = vmatprep.subr.mxu0 0.0
          %487 = vmatpush1.msra.mxu0 0.0
          %488 = vmatprep.subr.mxu0 0.0
          %489 = vmatpush1.msra.mxu0 0.0
          %490 = vmatprep.mubr.f32.mxu0 0.0
          %491 = vmatmul.mubr.f32.gmra.mrb[0].mxu0 %v424
          %v492 = vpop.f32.mrb[0].mxu0
          %v493 = vadd.f32 0.0, %v492
          %v494 = vpop.f32.mrb[0].mxu0
          %v495 = vadd.f32 0.0, %v494
          %496 = vdwg.mxu0
          %v497 = vld [vmem:[%s360] sm:$0xff]
          %v499 = vcombine.low %v497, %v497
          %vm501 = vcmask 1043456
          %v502 = vsel %vm501, %v493, %v499
          %v503 = vsel %vm501, %v495, %v497
          %v504 = vld [vmem:[%s3] sm:$0xff]
          %507 = vrot.lane.b32.xlu0 %v502, 17
          %v508 = vpop.permute.xlu0 %507
          %509 = vrot.lane.b32.xlu0 %v503, 17
          %v510 = vpop.permute.xlu0 %509
          %vm511 = vcmask 138240
          %v512 = vsel %vm511, %v508, %v510
          %v516 = vsel %vm511, 0.0, %v508
          %v517 = vsel %vm511, %v510, 0.0
          %v518 = vsel %vm390, 1, 0
          %v519 = vsel %vm391, 1, 0
          %vm520 = vcmp.eq.s32.totalorder %v518, 1
          %vm521 = vcmp.eq.s32.totalorder %v519, 1
          %v522 = vsel %vm520, %v516, 0.0
          %v523 = vsel %vm521, %v512, 0.0
          %v524 = vsel %vm392, 1, 0
          %v525 = vsel %vm393, 1, 0
          %vm526 = vcmp.eq.s32.totalorder %v524, 1
          %vm527 = vcmp.eq.s32.totalorder %v525, 1
          %530 = vrot.lane.b32.xlu0 %v516, 126
          %v531 = vpop.permute.xlu0 %530
          %532 = vrot.lane.b32.xlu0 %v512, 126
          %v533 = vpop.permute.xlu0 %532
          %534 = vrot.lane.b32.xlu0 %v517, 126
          %v535 = vpop.permute.xlu0 %534
          %vm536 = vcmask 1031168
          %v537 = vsel %vm536, %v531, %v533
          %v538 = vsel %vm536, %v533, %v535
          %v541 = vsel %vm526, %v537, 0.0
          %v542 = vsel %vm527, %v538, 0.0
          %543 = vrot.lane.b32.xlu0 %v516, 112
          %v544 = vpop.permute.xlu0 %543
          %545 = vrot.lane.b32.xlu0 %v512, 112
          %v546 = vpop.permute.xlu0 %545
          %547 = vrot.lane.b32.xlu0 %v517, 112
          %v548 = vpop.permute.xlu0 %547
          %vm549 = vcmask 916480
          %v550 = vsel %vm549, %v544, %v546
          %v551 = vsel %vm549, %v546, %v548
          %v554 = vsel %vm520, %v550, 0.0
          %v555 = vsel %vm521, %v551, 0.0
          %556 = vrot.lane.b32.xlu0 %v516, 110
          %v557 = vpop.permute.xlu0 %556
          %558 = vrot.lane.b32.xlu0 %v512, 110
          %v559 = vpop.permute.xlu0 %558
          %560 = vrot.lane.b32.xlu0 %v517, 110
          %v561 = vpop.permute.xlu0 %560
          %vm562 = vcmask 900096
          %v563 = vsel %vm562, %v557, %v559
          %v564 = vsel %vm562, %v559, %v561
          %v567 = vsel %vm526, %v563, 0.0
          %v568 = vsel %vm527, %v564, 0.0
          %569 = vrot.lane.b32.xlu0 %v516, 96
          %v570 = vpop.permute.xlu0 %569
          %571 = vrot.lane.b32.xlu0 %v512, 96
          %v572 = vpop.permute.xlu0 %571
          %573 = vrot.lane.b32.xlu0 %v517, 96
          %v574 = vpop.permute.xlu0 %573
          %vm575 = vcmask 785408
          %v576 = vsel %vm575, %v570, %v572
          %v577 = vsel %vm575, %v572, %v574
          %v580 = vsel %vm520, %v576, 0.0
          %v581 = vsel %vm521, %v577, 0.0
          %582 = vrot.lane.b32.xlu0 %v516, 94
          %v583 = vpop.permute.xlu0 %582
          %584 = vrot.lane.b32.xlu0 %v512, 94
          %v585 = vpop.permute.xlu0 %584
          %586 = vrot.lane.b32.xlu0 %v517, 94
          %v587 = vpop.permute.xlu0 %586
          %vm588 = vcmask 769024
          %v589 = vsel %vm588, %v583, %v585
          %v590 = vsel %vm588, %v585, %v587
          %v593 = vsel %vm526, %v589, 0.0
          %v594 = vsel %vm527, %v590, 0.0
          %595 = vrot.lane.b32.xlu0 %v516, 127
          %v596 = vpop.permute.xlu0 %595
          %597 = vrot.lane.b32.xlu0 %v512, 127
          %v598 = vpop.permute.xlu0 %597
          %599 = vrot.lane.b32.xlu0 %v517, 127
          %v600 = vpop.permute.xlu0 %599
          %vm601 = vcmask 1039360
          %v602 = vsel %vm601, %v596, %v598
          %v603 = vsel %vm601, %v598, %v600
          %606 = vrot.lane.b32.xlu0 %v516, 111
          %v607 = vpop.permute.xlu0 %606
          %608 = vrot.lane.b32.xlu0 %v512, 111
          %v609 = vpop.permute.xlu0 %608
          %610 = vrot.lane.b32.xlu0 %v517, 111
          %v611 = vpop.permute.xlu0 %610
          %vm612 = vcmask 908288
          %v613 = vsel %vm612, %v607, %v609
          %v614 = vsel %vm612, %v609, %v611
          %617 = vrot.lane.b32.xlu0 %v516, 95
          %v618 = vpop.permute.xlu0 %617
          %619 = vrot.lane.b32.xlu0 %v512, 95
          %v620 = vpop.permute.xlu0 %619
          %621 = vrot.lane.b32.xlu0 %v517, 95
          %v622 = vpop.permute.xlu0 %621
          %vm623 = vcmask 777216
          %v624 = vsel %vm623, %v618, %v620
          %v625 = vsel %vm623, %v620, %v622
          %vm628 = vcmask 588800
          %v630 = vsel %vm628, %v504, 0
          %632 = vmatprep.subr.mxu0 %v523
          %633 = vmatpush1.msra.mxu0 %v522
          %634 = vmatprep.subr.mxu0 %v603
          %635 = vmatpush1.msra.mxu0 %v602
          %636 = vmatprep.subr.mxu0 %v542
          %637 = vmatpush1.msra.mxu0 %v541
          %638 = vmatprep.subr.mxu0 %v555
          %639 = vmatpush1.msra.mxu0 %v554
          %640 = vmatprep.subr.mxu0 %v614
          %641 = vmatpush1.msra.mxu0 %v613
          %642 = vmatprep.subr.mxu0 %v568
          %643 = vmatpush1.msra.mxu0 %v567
          %644 = vmatprep.subr.mxu0 %v581
          %645 = vmatpush1.msra.mxu0 %v580
          %646 = vmatprep.subr.mxu0 %v625
          %647 = vmatpush1.msra.mxu0 %v624
          %648 = vmatprep.subr.mxu0 %v594
          %649 = vmatpush1.msra.mxu0 %v593
          %650 = vmatprep.subr.mxu0 0.0
          %651 = vmatpush1.msra.mxu0 0.0
          %652 = vmatprep.subr.mxu0 0.0
          %653 = vmatpush1.msra.mxu0 0.0
          %654 = vmatprep.subr.mxu0 0.0
          %655 = vmatpush1.msra.mxu0 0.0
          %656 = vmatprep.subr.mxu0 0.0
          %657 = vmatpush1.msra.mxu0 0.0
          %658 = vmatprep.subr.mxu0 0.0
          %659 = vmatpush1.msra.mxu0 0.0
          %660 = vmatprep.subr.mxu0 0.0
          %661 = vmatpush1.msra.mxu0 0.0
          %662 = vmatprep.subr.mxu0 0.0
          %663 = vmatpush1.msra.mxu0 0.0
          %664 = vmatprep.subr.mxu0 0.0
          %665 = vmatpush1.msra.mxu0 0.0
          %666 = vmatprep.subr.mxu0 0.0
          %667 = vmatpush1.msra.mxu0 0.0
          %668 = vmatprep.subr.mxu0 0.0
          %669 = vmatpush1.msra.mxu0 0.0
          %670 = vmatprep.subr.mxu0 0.0
          %671 = vmatpush1.msra.mxu0 0.0
          %672 = vmatprep.subr.mxu0 0.0
          %673 = vmatpush1.msra.mxu0 0.0
          %674 = vmatprep.subr.mxu0 0.0
          %675 = vmatpush1.msra.mxu0 0.0
          %676 = vmatprep.subr.mxu0 0.0
          %677 = vmatpush1.msra.mxu0 0.0
          %678 = vmatprep.subr.mxu0 0.0
          %679 = vmatpush1.msra.mxu0 0.0
          %680 = vmatprep.subr.mxu0 0.0
          %681 = vmatpush1.msra.mxu0 0.0
          %682 = vmatprep.subr.mxu0 0.0
          %683 = vmatpush1.msra.mxu0 0.0
          %684 = vmatprep.subr.mxu0 0.0
          %685 = vmatpush1.msra.mxu0 0.0
          %686 = vmatprep.subr.mxu0 0.0
          %687 = vmatpush1.msra.mxu0 0.0
          %688 = vmatprep.subr.mxu0 0.0
          %689 = vmatpush1.msra.mxu0 0.0
          %690 = vmatprep.subr.mxu0 0.0
          %691 = vmatpush1.msra.mxu0 0.0
          %692 = vmatprep.subr.mxu0 0.0
          %693 = vmatpush1.msra.mxu0 0.0
          %694 = vmatprep.subr.mxu0 0.0
          %695 = vmatpush1.msra.mxu0 0.0
          %696 = vmatprep.mubr.f32.mxu0 0.0
          %697 = vmatmul.mubr.f32.gmra.mrb[0].mxu0 %v630
          %v698 = vpop.f32.mrb[0].mxu0
          %v699 = vadd.f32 0.0, %v698
          %v700 = vpop.f32.mrb[0].mxu0
          %v701 = vadd.f32 0.0, %v700
          %702 = vdwg.mxu0
          %s703 = smul.u32 %s30, 2
          %s704 = smul.addr %s703, 8
          %s705 = scalar_lea.vmem [#allocation2], %s704
          %706 = vst [vmem:[%s705] sm:$0xff] %v699
          %707 = vst [vmem:[%s705 + $0x8] sm:$0xff] %v701
          %708 = vst [vmem:[%s351] sm:$0xff] %v699
          %709 = vst [vmem:[%s351 + $0x8] sm:$0xff] %v701
          %v710 = vld [vmem:[#allocation3] sm:$0xff]
          %v711 = vadd.f32 %v699, %v701
          %712 = vadd.xlane.f32.xlu0 %v711
          %v713 = vpop.xlane.xlu0 %712
          %v714 = vadd.f32 %v710, %v713
          %vm715 = vcmask 7168
          %716 = vst.msk [vmem:[#allocation3] sm:$0xff] %vm715, %v714
          %v717 = vld [vmem:[#allocation4] sm:$0xff]
          %v718 = vmul.f32 %v699, %v699
          %v719 = vmul.f32 %v701, %v701
          %v720 = vadd.f32 %v718, %v719
          %721 = vadd.xlane.f32.xlu0 %v720
          %v722 = vpop.xlane.xlu0 %721
          %v723 = vadd.f32 %v717, %v722
          %724 = vst.msk [vmem:[#allocation4] sm:$0xff] %vm715, %v723
        $region60: #{tpu_custom_call.1} parent=47 // pred_fallthru
          _
        %p725 = scmp.eq.s32.totalorder %s29, 1
        // Predicated region
        $region65: #{tpu_custom_call.1} parent=47 // pred_check
          %p726 = pneg %p725
        $region66: #{tpu_custom_call.1} parent=47 // pred_check_branch
          %728 = sbr.rel (%p726) target = $region68
        $region67: #{tpu_custom_call.1} parent=47 // pred_region
          %p729 = scmp.eq.s32.totalorder %s30, 0
          // Predicated region
          $region69: #{tpu_custom_call.1} parent=67 // pred_check
            %p730 = pneg %p729
          $region70: #{tpu_custom_call.1} parent=67 // pred_check_branch
            %732 = sbr.rel (%p730) target = $region72
          $region71: #{tpu_custom_call.1} parent=67 // pred_region
            %v733 = vld [vmem:[#allocation3] sm:$0xff]
            %v734 = vmul.f32 %v733, 0.001953125
            %v735 = vld [vmem:[#allocation4] sm:$0xff]
            %v736 = vmul.f32 %v735, 0.001953125
            %v737 = vmul.f32 %v734, %v734
            %v738 = vsub.f32 %v736, %v737
            %v739 = vadd.f32 %v738, 1e-05
            %v740 = vrsqrt.pop %v739
            %v741 = vld [vmem:[%s5] sm:$0xff]
            %v742 = vmul.f32 %v740, %v741
            %vm743 = vcmask 7168
            %744 = vst.msk [vmem:[#allocation5] sm:$0xff] %vm743, %v742
            %v745 = vld [vmem:[%s6] sm:$0xff]
            %v746 = vmul.f32 %v734, %v742
            %v747 = vsub.f32 %v745, %v746
            %748 = vst.msk [vmem:[#allocation6] sm:$0xff] %vm743, %v747
            %749 = vst.msk [vmem:[#allocation3] sm:$0xff] %vm743, 0.0
            %750 = vst.msk [vmem:[#allocation4] sm:$0xff] %vm743, 0.0
          $region72: #{tpu_custom_call.1} parent=67 // pred_fallthru
            _
          %s751 = smul.u32 %s30, 2
          %s752 = smul.addr %s751, 8
          %s753 = scalar_lea.vmem [#allocation2], %s752
          %v754 = vld [vmem:[%s753] sm:$0xff]
          %v755 = vld [vmem:[%s753 + $0x8] sm:$0xff]
          %v756 = vld [vmem:[#allocation5] sm:$0xff]
          %758 = vset.pattern.permute.xlu0 0
          %759 = vperm.xlu0 %758, %v756
          %v760 = vpop.permute.xlu0 %759
          %v762 = vmul.f32 %v754, %v760
          %v763 = vmul.f32 %v755, %v760
          %v764 = vld [vmem:[#allocation6] sm:$0xff]
          %766 = vset.pattern.permute.xlu0 0
          %767 = vperm.xlu0 %766, %v764
          %v768 = vpop.permute.xlu0 %767
          %v770 = vadd.f32 %v762, %v768
          %v771 = vadd.f32 %v763, %v768
          %v772 = vmax.f32 %v770, 0.0
          %v773 = vmax.f32 %v771, 0.0
          %v774 = vld [vmem:[%s4] sm:$0xff]
          %777 = vrot.lane.b32.xlu0 %v772, 17
          %v778 = vpop.permute.xlu0 %777
          %779 = vrot.lane.b32.xlu0 %v773, 17
          %v780 = vpop.permute.xlu0 %779
          %vm781 = vcmask 138240
          %v782 = vsel %vm781, %v778, %v780
          %v786 = vsel %vm781, 0.0, %v778
          %v787 = vsel %vm781, %v780, 0.0
          %v788 = vsel %vm390, 1, 0
          %v789 = vsel %vm391, 1, 0
          %vm790 = vcmp.eq.s32.totalorder %v788, 1
          %vm791 = vcmp.eq.s32.totalorder %v789, 1
          %v792 = vsel %vm790, %v786, 0.0
          %v793 = vsel %vm791, %v782, 0.0
          %v794 = vsel %vm392, 1, 0
          %v795 = vsel %vm393, 1, 0
          %vm796 = vcmp.eq.s32.totalorder %v794, 1
          %vm797 = vcmp.eq.s32.totalorder %v795, 1
          %800 = vrot.lane.b32.xlu0 %v786, 126
          %v801 = vpop.permute.xlu0 %800
          %802 = vrot.lane.b32.xlu0 %v782, 126
          %v803 = vpop.permute.xlu0 %802
          %804 = vrot.lane.b32.xlu0 %v787, 126
          %v805 = vpop.permute.xlu0 %804
          %vm806 = vcmask 1031168
          %v807 = vsel %vm806, %v801, %v803
          %v808 = vsel %vm806, %v803, %v805
          %v811 = vsel %vm796, %v807, 0.0
          %v812 = vsel %vm797, %v808, 0.0
          %813 = vrot.lane.b32.xlu0 %v786, 112
          %v814 = vpop.permute.xlu0 %813
          %815 = vrot.lane.b32.xlu0 %v782, 112
          %v816 = vpop.permute.xlu0 %815
          %817 = vrot.lane.b32.xlu0 %v787, 112
          %v818 = vpop.permute.xlu0 %817
          %vm819 = vcmask 916480
          %v820 = vsel %vm819, %v814, %v816
          %v821 = vsel %vm819, %v816, %v818
          %v824 = vsel %vm790, %v820, 0.0
          %v825 = vsel %vm791, %v821, 0.0
          %826 = vrot.lane.b32.xlu0 %v786, 110
          %v827 = vpop.permute.xlu0 %826
          %828 = vrot.lane.b32.xlu0 %v782, 110
          %v829 = vpop.permute.xlu0 %828
          %830 = vrot.lane.b32.xlu0 %v787, 110
          %v831 = vpop.permute.xlu0 %830
          %vm832 = vcmask 900096
          %v833 = vsel %vm832, %v827, %v829
          %v834 = vsel %vm832, %v829, %v831
          %v837 = vsel %vm796, %v833, 0.0
          %v838 = vsel %vm797, %v834, 0.0
          %839 = vrot.lane.b32.xlu0 %v786, 96
          %v840 = vpop.permute.xlu0 %839
          %841 = vrot.lane.b32.xlu0 %v782, 96
          %v842 = vpop.permute.xlu0 %841
          %843 = vrot.lane.b32.xlu0 %v787, 96
          %v844 = vpop.permute.xlu0 %843
          %vm845 = vcmask 785408
          %v846 = vsel %vm845, %v840, %v842
          %v847 = vsel %vm845, %v842, %v844
          %v850 = vsel %vm790, %v846, 0.0
          %v851 = vsel %vm791, %v847, 0.0
          %852 = vrot.lane.b32.xlu0 %v786, 94
          %v853 = vpop.permute.xlu0 %852
          %854 = vrot.lane.b32.xlu0 %v782, 94
          %v855 = vpop.permute.xlu0 %854
          %856 = vrot.lane.b32.xlu0 %v787, 94
          %v857 = vpop.permute.xlu0 %856
          %vm858 = vcmask 769024
          %v859 = vsel %vm858, %v853, %v855
          %v860 = vsel %vm858, %v855, %v857
          %v863 = vsel %vm796, %v859, 0.0
          %v864 = vsel %vm797, %v860, 0.0
          %865 = vrot.lane.b32.xlu0 %v786, 127
          %v866 = vpop.permute.xlu0 %865
          %867 = vrot.lane.b32.xlu0 %v782, 127
          %v868 = vpop.permute.xlu0 %867
          %869 = vrot.lane.b32.xlu0 %v787, 127
          %v870 = vpop.permute.xlu0 %869
          %vm871 = vcmask 1039360
          %v872 = vsel %vm871, %v866, %v868
          %v873 = vsel %vm871, %v868, %v870
          %876 = vrot.lane.b32.xlu0 %v786, 111
          %v877 = vpop.permute.xlu0 %876
          %878 = vrot.lane.b32.xlu0 %v782, 111
          %v879 = vpop.permute.xlu0 %878
          %880 = vrot.lane.b32.xlu0 %v787, 111
          %v881 = vpop.permute.xlu0 %880
          %vm882 = vcmask 908288
          %v883 = vsel %vm882, %v877, %v879
          %v884 = vsel %vm882, %v879, %v881
          %887 = vrot.lane.b32.xlu0 %v786, 95
          %v888 = vpop.permute.xlu0 %887
          %889 = vrot.lane.b32.xlu0 %v782, 95
          %v890 = vpop.permute.xlu0 %889
          %891 = vrot.lane.b32.xlu0 %v787, 95
          %v892 = vpop.permute.xlu0 %891
          %vm893 = vcmask 777216
          %v894 = vsel %vm893, %v888, %v890
          %v895 = vsel %vm893, %v890, %v892
          %vm898 = vcmask 588800
          %v900 = vsel %vm898, %v774, 0
          %902 = vmatprep.subr.mxu0 %v793
          %903 = vmatpush1.msra.mxu0 %v792
          %904 = vmatprep.subr.mxu0 %v873
          %905 = vmatpush1.msra.mxu0 %v872
          %906 = vmatprep.subr.mxu0 %v812
          %907 = vmatpush1.msra.mxu0 %v811
          %908 = vmatprep.subr.mxu0 %v825
          %909 = vmatpush1.msra.mxu0 %v824
          %910 = vmatprep.subr.mxu0 %v884
          %911 = vmatpush1.msra.mxu0 %v883
          %912 = vmatprep.subr.mxu0 %v838
          %913 = vmatpush1.msra.mxu0 %v837
          %914 = vmatprep.subr.mxu0 %v851
          %915 = vmatpush1.msra.mxu0 %v850
          %916 = vmatprep.subr.mxu0 %v895
          %917 = vmatpush1.msra.mxu0 %v894
          %918 = vmatprep.subr.mxu0 %v864
          %919 = vmatpush1.msra.mxu0 %v863
          %920 = vmatprep.subr.mxu0 0.0
          %921 = vmatpush1.msra.mxu0 0.0
          %922 = vmatprep.subr.mxu0 0.0
          %923 = vmatpush1.msra.mxu0 0.0
          %924 = vmatprep.subr.mxu0 0.0
          %925 = vmatpush1.msra.mxu0 0.0
          %926 = vmatprep.subr.mxu0 0.0
          %927 = vmatpush1.msra.mxu0 0.0
          %928 = vmatprep.subr.mxu0 0.0
          %929 = vmatpush1.msra.mxu0 0.0
          %930 = vmatprep.subr.mxu0 0.0
          %931 = vmatpush1.msra.mxu0 0.0
          %932 = vmatprep.subr.mxu0 0.0
          %933 = vmatpush1.msra.mxu0 0.0
          %934 = vmatprep.subr.mxu0 0.0
          %935 = vmatpush1.msra.mxu0 0.0
          %936 = vmatprep.subr.mxu0 0.0
          %937 = vmatpush1.msra.mxu0 0.0
          %938 = vmatprep.subr.mxu0 0.0
          %939 = vmatpush1.msra.mxu0 0.0
          %940 = vmatprep.subr.mxu0 0.0
          %941 = vmatpush1.msra.mxu0 0.0
          %942 = vmatprep.subr.mxu0 0.0
          %943 = vmatpush1.msra.mxu0 0.0
          %944 = vmatprep.subr.mxu0 0.0
          %945 = vmatpush1.msra.mxu0 0.0
          %946 = vmatprep.subr.mxu0 0.0
          %947 = vmatpush1.msra.mxu0 0.0
          %948 = vmatprep.subr.mxu0 0.0
          %949 = vmatpush1.msra.mxu0 0.0
          %950 = vmatprep.subr.mxu0 0.0
          %951 = vmatpush1.msra.mxu0 0.0
          %952 = vmatprep.subr.mxu0 0.0
          %953 = vmatpush1.msra.mxu0 0.0
          %954 = vmatprep.subr.mxu0 0.0
          %955 = vmatpush1.msra.mxu0 0.0
          %956 = vmatprep.subr.mxu0 0.0
          %957 = vmatpush1.msra.mxu0 0.0
          %958 = vmatprep.subr.mxu0 0.0
          %959 = vmatpush1.msra.mxu0 0.0
          %960 = vmatprep.subr.mxu0 0.0
          %961 = vmatpush1.msra.mxu0 0.0
          %962 = vmatprep.subr.mxu0 0.0
          %963 = vmatpush1.msra.mxu0 0.0
          %964 = vmatprep.subr.mxu0 0.0
          %965 = vmatpush1.msra.mxu0 0.0
          %966 = vmatprep.mubr.f32.mxu0 0.0
          %967 = vmatmul.mubr.f32.gmra.mrb[0].mxu0 %v900
          %v968 = vpop.f32.mrb[0].mxu0
          %v969 = vadd.f32 0.0, %v968
          %v970 = vpop.f32.mrb[0].mxu0
          %v971 = vadd.f32 0.0, %v970
          %972 = vdwg.mxu0
          %973 = vst [vmem:[%s753] sm:$0xff] %v969
          %974 = vst [vmem:[%s753 + $0x8] sm:$0xff] %v971
          %975 = vst [vmem:[%s351] sm:$0xff] %v969
          %976 = vst [vmem:[%s351 + $0x8] sm:$0xff] %v971
          %v977 = vld [vmem:[#allocation3] sm:$0xff]
          %v978 = vadd.f32 %v969, %v971
          %979 = vadd.xlane.f32.xlu0 %v978
          %v980 = vpop.xlane.xlu0 %979
          %v981 = vadd.f32 %v977, %v980
          %vm982 = vcmask 7168
          %983 = vst.msk [vmem:[#allocation3] sm:$0xff] %vm982, %v981
          %v984 = vld [vmem:[#allocation4] sm:$0xff]
          %v985 = vmul.f32 %v969, %v969
          %v986 = vmul.f32 %v971, %v971
          %v987 = vadd.f32 %v985, %v986
          %988 = vadd.xlane.f32.xlu0 %v987
          %v989 = vpop.xlane.xlu0 %988
          %v990 = vadd.f32 %v984, %v989
          %991 = vst.msk [vmem:[#allocation4] sm:$0xff] %vm982, %v990
        $region68: #{tpu_custom_call.1} parent=47 // pred_fallthru
          _
        %p992 = scmp.eq.s32.totalorder %s29, 2
        // Predicated region
        $region73: #{tpu_custom_call.1} parent=47 // pred_check
          %p993 = pneg %p992
        $region74: #{tpu_custom_call.1} parent=47 // pred_check_branch
          %995 = sbr.rel (%p993) target = $region76
        $region75: #{tpu_custom_call.1} parent=47 // pred_region
          %p996 = scmp.eq.s32.totalorder %s30, 0
          // Predicated region
          $region77: #{tpu_custom_call.1} parent=75 // pred_check
            %p997 = pneg %p996
          $region78: #{tpu_custom_call.1} parent=75 // pred_check_branch
            %999 = sbr.rel (%p997) target = $region80
          $region79: #{tpu_custom_call.1} parent=75 // pred_region
            %v1000 = vld [vmem:[#allocation3] sm:$0xff]
            %v1001 = vmul.f32 %v1000, 0.001953125
            %v1002 = vld [vmem:[#allocation4] sm:$0xff]
            %v1003 = vmul.f32 %v1002, 0.001953125
            %v1004 = vmul.f32 %v1001, %v1001
            %v1005 = vsub.f32 %v1003, %v1004
            %v1006 = vadd.f32 %v1005, 1e-05
            %v1007 = vrsqrt.pop %v1006
            %v1008 = vld [vmem:[%s5] sm:$0xff]
            %1010 = vrot.lane.b32.xlu0 %v1008, 127
            %v1011 = vpop.permute.xlu0 %1010
            %v1013 = vmul.f32 %v1007, %v1011
            %vm1014 = vcmask 7168
            %1015 = vst.msk [vmem:[#allocation5] sm:$0xff] %vm1014, %v1013
            %v1016 = vld [vmem:[%s6] sm:$0xff]
            %v1017 = vmul.f32 %v1001, %v1013
            %1019 = vrot.lane.b32.xlu0 %v1017, 1
            %v1020 = vpop.permute.xlu0 %1019
            %v1022 = vsub.f32 %v1016, %v1020
            %1024 = vrot.lane.b32.xlu0 %v1022, 127
            %v1025 = vpop.permute.xlu0 %1024
            %1027 = vst.msk [vmem:[#allocation6] sm:$0xff] %vm1014, %v1025
            %1028 = vst.msk [vmem:[#allocation3] sm:$0xff] %vm1014, 0.0
            %1029 = vst.msk [vmem:[#allocation4] sm:$0xff] %vm1014, 0.0
          $region80: #{tpu_custom_call.1} parent=75 // pred_fallthru
            _
          %s1030 = smul.u32 %s30, 2
          %s1031 = smul.addr %s1030, 8
          %s1032 = scalar_lea.vmem [#allocation2], %s1031
          %v1033 = vld [vmem:[%s1032] sm:$0xff]
          %v1034 = vld [vmem:[%s1032 + $0x8] sm:$0xff]
          %v1035 = vld [vmem:[#allocation5] sm:$0xff]
          %1037 = vset.pattern.permute.xlu0 0
          %1038 = vperm.xlu0 %1037, %v1035
          %v1039 = vpop.permute.xlu0 %1038
          %v1041 = vmul.f32 %v1033, %v1039
          %v1042 = vmul.f32 %v1034, %v1039
          %v1043 = vld [vmem:[#allocation6] sm:$0xff]
          %1045 = vset.pattern.permute.xlu0 0
          %1046 = vperm.xlu0 %1045, %v1043
          %v1047 = vpop.permute.xlu0 %1046
          %v1049 = vadd.f32 %v1041, %v1047
          %v1050 = vadd.f32 %v1042, %v1047
          %v1051 = vmax.f32 %v1049, 0.0
          %v1052 = vmax.f32 %v1050, 0.0
          %1053 = vst [vmem:[%s351] sm:$0xff] %v1051
          %1054 = vst [vmem:[%s351 + $0x8] sm:$0xff] %v1052
        $region76: #{tpu_custom_call.1} parent=47 // pred_fallthru
          _
        %s1055 = sand.u32 %s210, 1
        %s1056 = scalar_lea.sflag [#allocation9], %s1055
        %s1057 = sand.u32 %s210, 1
        %s1058 = smul.addr %s1057, 16
        %s1059 = scalar_lea.vmem [#allocation12], %s1058
        // Predicated region
        $region81: #{tpu_custom_call.1} parent=47 // pred_check
          %p1060 = pneg %p220
        $region82: #{tpu_custom_call.1} parent=47 // pred_check_branch
          %1062 = sbr.rel (%p1060) target = $region84
        $region83: #{tpu_custom_call.1} parent=47 // pred_region
          %s1064 = ssub.s32 256, 256
          %1065 = vsyncadd %s1056, %s1064
          %s1066 = smul.addr %s30, 2
          %s1067 = smul.addr %s1066, 128
          %s1068 = scalar_lea.hbm %s7, %s1067
          %s1070 = sshll.u32 %s1059, 4
          %s1071 = int_to_ptr.vmem [resolvable:$true] %s1070
          %1073 = dma.vmem_to_hbm [thread:$0]  %s1071, 256, %s1068, %s1056
        $region84: #{tpu_custom_call.1} parent=47 // pred_fallthru
          _
      $region48: #{tpu_custom_call.1} parent=5 // pred_fallthru
        _
      %p1074 = scmp.le.s32.totalorder 2, %s20
      // Predicated region
      $region85: #{tpu_custom_call.1} parent=5 // pred_check
        %p1075 = pneg %p1074
      $region86: #{tpu_custom_call.1} parent=5 // pred_check_branch
        %1077 = sbr.rel (%p1075) target = $region88
      $region87: #{tpu_custom_call.1} parent=5 // pred_region
        %s1078 = ssub.s32 %s20, 2
        // Predicated region
        $region89: #{tpu_custom_call.1} parent=87 // pred_check
          %p1079 = pneg %p226
        $region90: #{tpu_custom_call.1} parent=87 // pred_check_branch
          %1081 = sbr.rel (%p1079) target = $region92
        $region91: #{tpu_custom_call.1} parent=87 // pred_region
          %s1082 = sand.u32 %s211, 1
          %s1083 = scalar_lea.sflag [#allocation9], %s1082
          %s1084 = sand.u32 %s211, 1
          %s1085 = smul.addr %s1084, 16
          %s1086 = scalar_lea.vmem [#allocation12], %s1085
          %1087 = dma.done %s1083, 256
        $region92: #{tpu_custom_call.1} parent=87 // pred_fallthru
          _
      $region88: #{tpu_custom_call.1} parent=5 // pred_fallthru
        _
    $region6: #{tpu_custom_call.1} parent=1 // loop_footer
      %s24 = sadd.s32 1, %s20
    $region7: #{tpu_custom_call.1} parent=1 // loop_footer_branch
      %19 = sbr.rel target = $region3
    $region8: #{tpu_custom_call.1} parent=1 // loop_exit
      _
    %1088 = vsyncpa [#allocation8], 1
    %s1089 = scalar_lea.sflag [#allocation8], 1
    %1090 = vsyncpa %s1089, 1
    %1091 = vsyncpa [#allocation11], 1
    %1092 = vsyncpa [#allocation9], 1
    %s1093 = scalar_lea.sflag [#allocation9], 1
    %1094 = vsyncpa %s1093, 1

</llo_original>
